<compile_context>
chip_gen: v5e
topology: v5e:2x2
jax: 0.10.0
libtpu: 0.0.40
codegen_flags: <defaults>
</compile_context>

<pallas_src>
import functools
import math

import jax
import jax.numpy as jnp
from jax.experimental import pallas as pl
from jax.experimental.pallas import tpu as pltpu


# ------------------------------ small helpers -------------------------------

_SUBLANE = 16  # quantize row tiles to 16 so bf16 (16,128) sublane packing is respected


def _compiler_params(**kw):
    cls = getattr(pltpu, "CompilerParams", None) or getattr(pltpu, "TPUCompilerParams", None)
    return cls(**kw) if cls is not None else None


def _pick_tile_m(M, row_bytes, vmem_budget_bytes=8 << 20, max_tile=1024):
    """Rows per grid step: largest multiple of 16 (<= max_tile) whose double-buffered
    per-row traffic fits the VMEM budget; falls back to the full M when M is small
    (a full-extent block is always a legal BlockSpec)."""
    t = vmem_budget_bytes // max(1, 2 * row_bytes)     # 2x: pipeline double-buffering
    t = max(_SUBLANE, min(max_tile, (t // _SUBLANE) * _SUBLANE))
    return min(t, M)


# ------------------------------- Pallas kernels ------------------------------


def _conv1x9_vpu_kernel(x_ref, w_ref, b_ref, o_ref):
    """ReLU(x @ w + b) for tiny K (=9): 9 column-broadcast VPU FMAs, no MXU."""
    x = x_ref[...].astype(jnp.float32)                  # (TM, 9)
    w = w_ref[...].astype(jnp.float32)                  # (9, N)
    acc = jnp.zeros((x.shape[0], w.shape[1]), jnp.float32)
    for k in range(w.shape[0]):                         # static unroll, K == 9
        acc = acc + x[:, k:k + 1] * w[k:k + 1, :]
    acc = jnp.maximum(acc + b_ref[...], 0.0)
    o_ref[...] = acc.astype(o_ref.dtype)


def conv1_matvec(x, w, b, out_dtype=jnp.bfloat16, vmem_budget=8 << 20):
    """Conv1-as-patches: y = relu(x @ w + b), x:(M,9), done on the VPU (K=9 would
    waste >99% of the MXU).  Tiled over rows with parallel grid semantics."""
    M, K = x.shape
    _, N = w.shape
    row_bytes = K * x.dtype.itemsize + N * jnp.dtype(out_dtype).itemsize
    tile_m = _pick_tile_m(M, row_bytes, vmem_budget)
    return pl.pallas_call(
        _conv1x9_vpu_kernel,
        out_shape=jax.ShapeDtypeStruct((M, N), out_dtype),
        grid=(pl.cdiv(M, tile_m),),
        in_specs=[
            pl.BlockSpec((tile_m, K), lambda i: (i, 0)),
            pl.BlockSpec((K, N), lambda i: (0, 0)),      # constant block -> stays resident
            pl.BlockSpec((1, N), lambda i: (0, 0)),
        ],
        out_specs=pl.BlockSpec((tile_m, N), lambda i: (i, 0)),
        compiler_params=_compiler_params(dimension_semantics=("parallel",)),
    )(x, w, b.reshape(1, N))


def _matmul_bias_relu_kernel(x_ref, w_ref, b_ref, o_ref):
    acc = jnp.dot(x_ref[...], w_ref[...], preferred_element_type=jnp.float32)
    acc = jnp.maximum(acc + b_ref[...], 0.0)
    o_ref[...] = acc.astype(o_ref.dtype)


def matmul_bias_relu(x, w, b, out_dtype=jnp.bfloat16, vmem_budget=8 << 20):
    """y = relu(x @ w + b).  x/w are bf16 MXU operands, f32 accumulation/bias.
    Tiled over rows (M) with parallel grid semantics."""
    M, K = x.shape
    K2, N = w.shape
    assert K == K2
    row_bytes = K * x.dtype.itemsize + N * jnp.dtype(out_dtype).itemsize
    tile_m = _pick_tile_m(M, row_bytes, vmem_budget)
    return pl.pallas_call(
        _matmul_bias_relu_kernel,
        out_shape=jax.ShapeDtypeStruct((M, N), out_dtype),
        grid=(pl.cdiv(M, tile_m),),
        in_specs=[
            pl.BlockSpec((tile_m, K), lambda i: (i, 0)),
            pl.BlockSpec((K, N), lambda i: (0, 0)),      # resident weight block
            pl.BlockSpec((1, N), lambda i: (0, 0)),
        ],
        out_specs=pl.BlockSpec((tile_m, N), lambda i: (i, 0)),
        compiler_params=_compiler_params(dimension_semantics=("parallel",)),
    )(x, w, b.reshape(1, N).astype(jnp.float32))


def _linear_pe_ln_kernel(x_ref, w_ref, b_ref, pe_ref, g_ref, beta_ref, o_ref, *,
                         scale, eps):
    # out Linear (MXU, f32 acc) -> * sqrt(d_model) + PE -> LayerNorm, all in-register.
    acc = jnp.dot(x_ref[...], w_ref[...], preferred_element_type=jnp.float32)
    y = (acc + b_ref[...]) * scale + pe_ref[...]
    mean = jnp.mean(y, axis=-1, keepdims=True)
    var = jnp.mean(jnp.square(y - mean), axis=-1, keepdims=True)
    y = (y - mean) * jax.lax.rsqrt(var + eps)
    o_ref[...] = (y * g_ref[...] + beta_ref[...]).astype(o_ref.dtype)


def linear_pe_layernorm(x, w, b, pe_rows, gamma, beta, scale, eps=1e-12,
                        vmem_budget=8 << 20):
    """Fused: LayerNorm((x @ w + b) * scale + pe) over row tiles of x:(M,K)."""
    M, K = x.shape
    K2, N = w.shape
    assert K == K2 and pe_rows.shape == (M, N)
    row_bytes = K * x.dtype.itemsize + N * 4 + N * 4     # x row + pe row + f32 out row
    tile_m = _pick_tile_m(M, row_bytes, vmem_budget)
    kernel = functools.partial(_linear_pe_ln_kernel, scale=scale, eps=eps)
    return pl.pallas_call(
        kernel,
        out_shape=jax.ShapeDtypeStruct((M, N), jnp.float32),
        grid=(pl.cdiv(M, tile_m),),
        in_specs=[
            pl.BlockSpec((tile_m, K), lambda i: (i, 0)),
            pl.BlockSpec((K, N), lambda i: (0, 0)),
            pl.BlockSpec((1, N), lambda i: (0, 0)),
            pl.BlockSpec((tile_m, N), lambda i: (i, 0)),
            pl.BlockSpec((1, N), lambda i: (0, 0)),
            pl.BlockSpec((1, N), lambda i: (0, 0)),
        ],
        out_specs=pl.BlockSpec((tile_m, N), lambda i: (i, 0)),
        compiler_params=_compiler_params(dimension_semantics=("parallel",)),
    )(x, w, b.reshape(1, N), pe_rows, gamma.reshape(1, N), beta.reshape(1, N))


# --------------------------------- JAX glue ----------------------------------


def im2col(x, kh=3, kw=3, sh=2, sw=2):
    """x: (B, H, W, C) NHWC -> (B, T, F, kh*kw*C) patches, VALID, stride (sh, sw).

    Flattened patch index order is ((i*kw + j) * C + c), matching a weight tensor
    reshaped from (kh, kw, C_in, C_out) -> (kh*kw*C_in, C_out)."""
    B, H, W, C = x.shape
    T = (H - kh) // sh + 1
    F = (W - kw) // sw + 1
    cols = []
    for i in range(kh):
        for j in range(kw):
            cols.append(x[:, i: i + sh * (T - 1) + 1: sh,
                           j: j + sw * (F - 1) + 1: sw, :])
    p = jnp.stack(cols, axis=3)                          # (B, T, F, kh*kw, C)
    return p.reshape(B, T, F, kh * kw * C)


def sinusoidal_pe(length, d_model):
    """WeNet PositionalEncoding table pe[:, :length] -> (1, length, d_model) f32."""
    pos = jnp.arange(length, dtype=jnp.float32)[:, None]
    div = jnp.exp(
        jnp.arange(0, d_model, 2, dtype=jnp.float32) * -(math.log(10000.0) / d_model)
    )
    pe = jnp.zeros((length, d_model), dtype=jnp.float32)
    pe = pe.at[:, 0::2].set(jnp.sin(pos * div))
    pe = pe.at[:, 1::2].set(jnp.cos(pos * div))
    return pe[None]


def init_params(key, input_size, output_size):
    odim = output_size
    f1 = (input_size - 1) // 2          # freq dim after conv1
    f2 = (f1 - 1) // 2                  # freq dim after conv2
    k = jax.random.split(key, 6)
    params = {
        # conv1: Conv2d(1, odim, 3, stride=2); rows flattened as (kh*3 + kw).
        "conv1_w": 0.1 * jax.random.normal(k[0], (9, odim), jnp.float32),
        "conv1_b": 0.1 * jax.random.normal(k[1], (odim,), jnp.float32),
        # conv2: Conv2d(odim, odim, 3, stride=2); rows flattened ((kh*3+kw)*odim + c_in).
        "conv2_w": 0.1 * jax.random.normal(k[2], (9 * odim, odim), jnp.float32),
        "conv2_b": 0.1 * jax.random.normal(k[3], (odim,), jnp.float32),
        # out: Linear(odim * f2, odim).  Rows are stored in (freq, channel) order
        # (row = f*odim + c) so the conv2 output (B, T2, F2, odim) feeds it with a free
        # reshape and NO runtime transpose.  To import PyTorch W_pt of shape
        # (odim, odim*f2) (column = c*f2 + f): out_w[f*odim + c, :] = W_pt[:, c*f2 + f].
        "out_w": 0.1 * jax.random.normal(k[4], (f2 * odim, odim), jnp.float32),
        "out_b": 0.1 * jax.random.normal(k[5], (odim,), jnp.float32),
        # after_norm: LayerNorm(odim, eps=1e-12), PyTorch default init
        "ln_g": jnp.ones((odim,), jnp.float32),
        "ln_b": jnp.zeros((odim,), jnp.float32),
    }
    return params


def base_encoder_forward(params, xs_pad, xs_lens):
    """BaseEncoder.forward (input_layer='conv2d', abs_pos, normalize_before=True).

    xs_pad: (B, L, D) float32, xs_lens: (B,) int32.
    Returns (xs, masks): xs (B, T2, output_size) f32, masks (B, 1, T2) bool.
    """
    B, L, D = xs_pad.shape
    odim = params["conv1_w"].shape[1]

    # masks = ~make_pad_mask(xs_lens).unsqueeze(1)  -> True where valid
    valid = jnp.arange(L)[None, :] < xs_lens[:, None]           # (B, L)
    masks = valid[:, None, :]                                   # (B, 1, L)

    # ---- Conv2dSubsampling4: conv1 (C_in = 1) + ReLU ----
    x = xs_pad[:, :, :, None]                                   # (B, L, D, 1) NHWC
    p1 = im2col(x)                                              # (B, T1, F1, 9) f32
    T1, F1 = p1.shape[1], p1.shape[2]
    h1 = conv1_matvec(p1.reshape(-1, 9), params["conv1_w"], params["conv1_b"])
    h1 = h1.reshape(B, T1, F1, odim)                            # bf16 activations

    # ---- conv2 + ReLU (bf16 MXU operands, f32 accumulate) ----
    # TODO(synk): patches are still built by XLA slicing (9x read amplification of h1);
    #             in-kernel patch extraction over the VMEM tile is left as future work.
    p2 = im2col(h1)                                             # (B, T2, F2, 9*odim) bf16
    T2, F2 = p2.shape[1], p2.shape[2]
    h2 = matmul_bias_relu(p2.reshape(-1, 9 * odim),
                          params["conv2_w"].astype(jnp.bfloat16),
                          params["conv2_b"])                    # (B*T2*F2, odim) bf16

    # ---- out Linear + PositionalEncoding + after_norm (single fused kernel) ----
    # conv2 output rows are (b, t, f)-ordered, so (B*T2, F2*odim) is a free reshape;
    # the torch x.transpose(1, 2) is folded into out_w's row order instead.
    h2 = h2.reshape(B * T2, F2 * odim)
    pe = sinusoidal_pe(T2, odim)                                # (1, T2, odim) f32
    pe_rows = jnp.tile(pe[0], (B, 1))                           # (B*T2, odim)
    xs = linear_pe_layernorm(h2,
                             params["out_w"].astype(jnp.bfloat16),
                             params["out_b"], pe_rows,
                             params["ln_g"], params["ln_b"],
                             scale=math.sqrt(odim), eps=1e-12)  # eps=1e-12 per spec
    xs = xs.reshape(B, T2, odim)
    pos_emb = pe  # noqa: F841 (returned by embed; unused: abs_pos + no encoder layers)

    # mask subsampling: x_mask[:, :, :-2:2][:, :, :-2:2]
    masks = masks[:, :, :-2:2][:, :, :-2:2]                     # (B, 1, T2)
    chunk_masks = masks  # noqa: F841 (use_dynamic_chunk=False, static_chunk_size=0)

    # TODO(synk): `self.encoders` is not created in BaseEncoder.__init__ (subclass
    #             responsibility); the encoder-layer loop is therefore a no-op here.

    # normalize_before=True -> after_norm (already fused into the last kernel above)
    return xs, masks


# ----------------------------------- main ------------------------------------

if __name__ == "__main__":
    B, L, INPUT_SIZE, OUTPUT_SIZE = 2, 32, 16, 32

    key = jax.random.PRNGKey(0)
    k_x, k_p = jax.random.split(key)
    xs_pad = jax.random.normal(k_x, (B, L, INPUT_SIZE), jnp.float32)
    xs_lens = jnp.array([32, 25], dtype=jnp.int32)

    params = init_params(k_p, INPUT_SIZE, OUTPUT_SIZE)

    fwd = jax.jit(base_encoder_forward)
    xs, masks = fwd(params, xs_pad, xs_lens)
    jax.block_until_ready(xs)
    jax.block_until_ready(masks)

    # sanity: shapes implied by Conv2dSubsampling4 (two 3x3 stride-2 convs)
    T2 = ((L - 1) // 2 - 1) // 2
    assert xs.shape == (B, T2, OUTPUT_SIZE)
    assert xs.dtype == jnp.float32
    assert masks.shape == (B, 1, T2)
    assert masks.dtype == jnp.bool_
    assert bool(jnp.all(jnp.isfinite(xs)))

    print("KERNEL_OK")
</pallas_src>

<mosaic_0001>
module attributes {stable_mosaic.version = 11 : i64} {
  func.func @_conv1x9_vpu_kernel(%arg0: i32, %arg1: memref<210x9xf32, #tpu.memory_space<vmem>>, %arg2: memref<9x32xf32, #tpu.memory_space<vmem>>, %arg3: memref<1x32xf32, #tpu.memory_space<vmem>>, %arg4: memref<210x32xbf16, #tpu.memory_space<vmem>>) attributes {dimension_semantics = [#tpu.dimension_semantics<parallel>], iteration_bounds = array<i64: 1>, scalar_prefetch = 0 : i64, scratch_operands = 0 : i64, tpu.core_type = #tpu.core_type<tc>, window_params = [{transform_indices = @transform_0, window_bounds = array<i64: 210, 9>}, {pipeline_mode = #tpu.pipeline_mode<synchronous>, transform_indices = @transform_1, window_bounds = array<i64: 9, 32>}, {pipeline_mode = #tpu.pipeline_mode<synchronous>, transform_indices = @transform_2, window_bounds = array<i64: 1, 32>}, {transform_indices = @transform_3, window_bounds = array<i64: 210, 32>}]} {
    %c0 = arith.constant 0 : index
    %c0_0 = arith.constant 0 : index
    %0 = vector.load %arg1[%c0, %c0_0] : memref<210x9xf32, #tpu.memory_space<vmem>>, vector<210x9xf32>
    %c0_1 = arith.constant 0 : index
    %c0_2 = arith.constant 0 : index
    %1 = vector.load %arg2[%c0_1, %c0_2] : memref<9x32xf32, #tpu.memory_space<vmem>>, vector<9x32xf32>
    %cst = arith.constant 0.000000e+00 : f32
    %2 = vector.broadcast %cst : f32 to vector<210x32xf32>
    %3 = vector.extract_strided_slice %0 {offsets = [0, 0], sizes = [210, 1], strides = [1, 1]} : vector<210x9xf32> to vector<210x1xf32>
    %4 = vector.extract_strided_slice %1 {offsets = [0, 0], sizes = [1, 32], strides = [1, 1]} : vector<9x32xf32> to vector<1x32xf32>
    %5 = vector.broadcast %3 : vector<210x1xf32> to vector<210x32xf32>
    %6 = vector.broadcast %4 : vector<1x32xf32> to vector<210x32xf32>
    %7 = arith.mulf %5, %6 : vector<210x32xf32>
    %8 = arith.addf %2, %7 : vector<210x32xf32>
    %9 = vector.extract_strided_slice %0 {offsets = [0, 1], sizes = [210, 1], strides = [1, 1]} : vector<210x9xf32> to vector<210x1xf32>
    %10 = vector.extract_strided_slice %1 {offsets = [1, 0], sizes = [1, 32], strides = [1, 1]} : vector<9x32xf32> to vector<1x32xf32>
    %11 = vector.broadcast %9 : vector<210x1xf32> to vector<210x32xf32>
    %12 = vector.broadcast %10 : vector<1x32xf32> to vector<210x32xf32>
    %13 = arith.mulf %11, %12 : vector<210x32xf32>
    %14 = arith.addf %8, %13 : vector<210x32xf32>
    %15 = vector.extract_strided_slice %0 {offsets = [0, 2], sizes = [210, 1], strides = [1, 1]} : vector<210x9xf32> to vector<210x1xf32>
    %16 = vector.extract_strided_slice %1 {offsets = [2, 0], sizes = [1, 32], strides = [1, 1]} : vector<9x32xf32> to vector<1x32xf32>
    %17 = vector.broadcast %15 : vector<210x1xf32> to vector<210x32xf32>
    %18 = vector.broadcast %16 : vector<1x32xf32> to vector<210x32xf32>
    %19 = arith.mulf %17, %18 : vector<210x32xf32>
    %20 = arith.addf %14, %19 : vector<210x32xf32>
    %21 = vector.extract_strided_slice %0 {offsets = [0, 3], sizes = [210, 1], strides = [1, 1]} : vector<210x9xf32> to vector<210x1xf32>
    %22 = vector.extract_strided_slice %1 {offsets = [3, 0], sizes = [1, 32], strides = [1, 1]} : vector<9x32xf32> to vector<1x32xf32>
    %23 = vector.broadcast %21 : vector<210x1xf32> to vector<210x32xf32>
    %24 = vector.broadcast %22 : vector<1x32xf32> to vector<210x32xf32>
    %25 = arith.mulf %23, %24 : vector<210x32xf32>
    %26 = arith.addf %20, %25 : vector<210x32xf32>
    %27 = vector.extract_strided_slice %0 {offsets = [0, 4], sizes = [210, 1], strides = [1, 1]} : vector<210x9xf32> to vector<210x1xf32>
    %28 = vector.extract_strided_slice %1 {offsets = [4, 0], sizes = [1, 32], strides = [1, 1]} : vector<9x32xf32> to vector<1x32xf32>
    %29 = vector.broadcast %27 : vector<210x1xf32> to vector<210x32xf32>
    %30 = vector.broadcast %28 : vector<1x32xf32> to vector<210x32xf32>
    %31 = arith.mulf %29, %30 : vector<210x32xf32>
    %32 = arith.addf %26, %31 : vector<210x32xf32>
    %33 = vector.extract_strided_slice %0 {offsets = [0, 5], sizes = [210, 1], strides = [1, 1]} : vector<210x9xf32> to vector<210x1xf32>
    %34 = vector.extract_strided_slice %1 {offsets = [5, 0], sizes = [1, 32], strides = [1, 1]} : vector<9x32xf32> to vector<1x32xf32>
    %35 = vector.broadcast %33 : vector<210x1xf32> to vector<210x32xf32>
    %36 = vector.broadcast %34 : vector<1x32xf32> to vector<210x32xf32>
    %37 = arith.mulf %35, %36 : vector<210x32xf32>
    %38 = arith.addf %32, %37 : vector<210x32xf32>
    %39 = vector.extract_strided_slice %0 {offsets = [0, 6], sizes = [210, 1], strides = [1, 1]} : vector<210x9xf32> to vector<210x1xf32>
    %40 = vector.extract_strided_slice %1 {offsets = [6, 0], sizes = [1, 32], strides = [1, 1]} : vector<9x32xf32> to vector<1x32xf32>
    %41 = vector.broadcast %39 : vector<210x1xf32> to vector<210x32xf32>
    %42 = vector.broadcast %40 : vector<1x32xf32> to vector<210x32xf32>
    %43 = arith.mulf %41, %42 : vector<210x32xf32>
    %44 = arith.addf %38, %43 : vector<210x32xf32>
    %45 = vector.extract_strided_slice %0 {offsets = [0, 7], sizes = [210, 1], strides = [1, 1]} : vector<210x9xf32> to vector<210x1xf32>
    %46 = vector.extract_strided_slice %1 {offsets = [7, 0], sizes = [1, 32], strides = [1, 1]} : vector<9x32xf32> to vector<1x32xf32>
    %47 = vector.broadcast %45 : vector<210x1xf32> to vector<210x32xf32>
    %48 = vector.broadcast %46 : vector<1x32xf32> to vector<210x32xf32>
    %49 = arith.mulf %47, %48 : vector<210x32xf32>
    %50 = arith.addf %44, %49 : vector<210x32xf32>
    %51 = vector.extract_strided_slice %0 {offsets = [0, 8], sizes = [210, 1], strides = [1, 1]} : vector<210x9xf32> to vector<210x1xf32>
    %52 = vector.extract_strided_slice %1 {offsets = [8, 0], sizes = [1, 32], strides = [1, 1]} : vector<9x32xf32> to vector<1x32xf32>
    %53 = vector.broadcast %51 : vector<210x1xf32> to vector<210x32xf32>
    %54 = vector.broadcast %52 : vector<1x32xf32> to vector<210x32xf32>
    %55 = arith.mulf %53, %54 : vector<210x32xf32>
    %56 = arith.addf %50, %55 : vector<210x32xf32>
    %c0_3 = arith.constant 0 : index
    %c0_4 = arith.constant 0 : index
    %57 = vector.load %arg3[%c0_3, %c0_4] : memref<1x32xf32, #tpu.memory_space<vmem>>, vector<1x32xf32>
    %58 = vector.broadcast %57 : vector<1x32xf32> to vector<210x32xf32>
    %59 = arith.addf %56, %58 : vector<210x32xf32>
    %cst_5 = arith.constant 0.000000e+00 : f32
    %60 = vector.broadcast %cst_5 : f32 to vector<210x32xf32>
    %61 = arith.maximumf %59, %60 : vector<210x32xf32>
    %62 = arith.truncf %61 : vector<210x32xf32> to vector<210x32xbf16>
    %c0_6 = arith.constant 0 : index
    %c0_7 = arith.constant 0 : index
    %63 = vector.load %arg4[%c0_6, %c0_7] : memref<210x32xbf16, #tpu.memory_space<vmem>>, vector<210x32xbf16>
    tpu.vector_store %arg4[%c0_6, %c0_7], %62 {strides = array<i32>} : memref<210x32xbf16, #tpu.memory_space<vmem>>, vector<210x32xbf16>,
    return
  }
  func.func @transform_0(%arg0: i32) -> (i32, i32) {
    %c0_i32 = arith.constant 0 : i32
    %c0_i32_0 = arith.constant 0 : i32
    return %arg0, %c0_i32 : i32, i32
  }
  func.func @transform_1(%arg0: i32) -> (i32, i32) {
    %c0_i32 = arith.constant 0 : i32
    %c0_i32_0 = arith.constant 0 : i32
    %c0_i32_1 = arith.constant 0 : i32
    return %c0_i32, %c0_i32_0 : i32, i32
  }
  func.func @transform_2(%arg0: i32) -> (i32, i32) {
    %c0_i32 = arith.constant 0 : i32
    %c0_i32_0 = arith.constant 0 : i32
    %c0_i32_1 = arith.constant 0 : i32
    return %c0_i32, %c0_i32_0 : i32, i32
  }
  func.func @transform_3(%arg0: i32) -> (i32, i32) {
    %c0_i32 = arith.constant 0 : i32
    %c0_i32_0 = arith.constant 0 : i32
    return %arg0, %c0_i32 : i32, i32
  }
}

module attributes {stable_mosaic.version = 11 : i64} {
  func.func @_matmul_bias_relu_kernel(%arg0: i32, %arg1: memref<42x288xbf16, #tpu.memory_space<vmem>>, %arg2: memref<288x32xbf16, #tpu.memory_space<vmem>>, %arg3: memref<1x32xf32, #tpu.memory_space<vmem>>, %arg4: memref<42x32xbf16, #tpu.memory_space<vmem>>) attributes {dimension_semantics = [#tpu.dimension_semantics<parallel>], iteration_bounds = array<i64: 1>, scalar_prefetch = 0 : i64, scratch_operands = 0 : i64, tpu.core_type = #tpu.core_type<tc>, window_params = [{transform_indices = @transform_0, window_bounds = array<i64: 42, 288>}, {pipeline_mode = #tpu.pipeline_mode<synchronous>, transform_indices = @transform_1, window_bounds = array<i64: 288, 32>}, {pipeline_mode = #tpu.pipeline_mode<synchronous>, transform_indices = @transform_2, window_bounds = array<i64: 1, 32>}, {transform_indices = @transform_3, window_bounds = array<i64: 42, 32>}]} {
    %c0 = arith.constant 0 : index
    %c0_0 = arith.constant 0 : index
    %0 = vector.load %arg1[%c0, %c0_0] : memref<42x288xbf16, #tpu.memory_space<vmem>>, vector<42x288xbf16>
    %c0_1 = arith.constant 0 : index
    %c0_2 = arith.constant 0 : index
    %1 = vector.load %arg2[%c0_1, %c0_2] : memref<288x32xbf16, #tpu.memory_space<vmem>>, vector<288x32xbf16>
    %cst = arith.constant dense<0.000000e+00> : vector<42x32xf32>
    %2 = tpu.matmul %0, %1, %cst {dimension_numbers = #tpu.dot_dimension_numbers<[1], [0], [0], [1], [0, 0, 1, 1], [], []>} : vector<42x288xbf16>, vector<288x32xbf16>, vector<42x32xf32> -> vector<42x32xf32>
    %c0_3 = arith.constant 0 : index
    %c0_4 = arith.constant 0 : index
    %3 = vector.load %arg3[%c0_3, %c0_4] : memref<1x32xf32, #tpu.memory_space<vmem>>, vector<1x32xf32>
    %4 = vector.broadcast %3 : vector<1x32xf32> to vector<42x32xf32>
    %5 = arith.addf %2, %4 : vector<42x32xf32>
    %cst_5 = arith.constant 0.000000e+00 : f32
    %6 = vector.broadcast %cst_5 : f32 to vector<42x32xf32>
    %7 = arith.maximumf %5, %6 : vector<42x32xf32>
    %8 = arith.truncf %7 : vector<42x32xf32> to vector<42x32xbf16>
    %c0_6 = arith.constant 0 : index
    %c0_7 = arith.constant 0 : index
    %9 = vector.load %arg4[%c0_6, %c0_7] : memref<42x32xbf16, #tpu.memory_space<vmem>>, vector<42x32xbf16>
    tpu.vector_store %arg4[%c0_6, %c0_7], %8 {strides = array<i32>} : memref<42x32xbf16, #tpu.memory_space<vmem>>, vector<42x32xbf16>,
    return
  }
  func.func @transform_0(%arg0: i32) -> (i32, i32) {
    %c0_i32 = arith.constant 0 : i32
    %c0_i32_0 = arith.constant 0 : i32
    return %arg0, %c0_i32 : i32, i32
  }
  func.func @transform_1(%arg0: i32) -> (i32, i32) {
    %c0_i32 = arith.constant 0 : i32
    %c0_i32_0 = arith.constant 0 : i32
    %c0_i32_1 = arith.constant 0 : i32
    return %c0_i32, %c0_i32_0 : i32, i32
  }
  func.func @transform_2(%arg0: i32) -> (i32, i32) {
    %c0_i32 = arith.constant 0 : i32
    %c0_i32_0 = arith.constant 0 : i32
    %c0_i32_1 = arith.constant 0 : i32
    return %c0_i32, %c0_i32_0 : i32, i32
  }
  func.func @transform_3(%arg0: i32) -> (i32, i32) {
    %c0_i32 = arith.constant 0 : i32
    %c0_i32_0 = arith.constant 0 : i32
    return %arg0, %c0_i32 : i32, i32
  }
}

module attributes {stable_mosaic.version = 11 : i64} {
  func.func @_linear_pe_ln_kernel(%arg0: i32, %arg1: memref<14x96xbf16, #tpu.memory_space<vmem>>, %arg2: memref<96x32xbf16, #tpu.memory_space<vmem>>, %arg3: memref<1x32xf32, #tpu.memory_space<vmem>>, %arg4: memref<14x32xf32, #tpu.memory_space<vmem>>, %arg5: memref<1x32xf32, #tpu.memory_space<vmem>>, %arg6: memref<1x32xf32, #tpu.memory_space<vmem>>, %arg7: memref<14x32xf32, #tpu.memory_space<vmem>>) attributes {dimension_semantics = [#tpu.dimension_semantics<parallel>], iteration_bounds = array<i64: 1>, scalar_prefetch = 0 : i64, scratch_operands = 0 : i64, tpu.core_type = #tpu.core_type<tc>, window_params = [{transform_indices = @transform_0, window_bounds = array<i64: 14, 96>}, {pipeline_mode = #tpu.pipeline_mode<synchronous>, transform_indices = @transform_1, window_bounds = array<i64: 96, 32>}, {pipeline_mode = #tpu.pipeline_mode<synchronous>, transform_indices = @transform_2, window_bounds = array<i64: 1, 32>}, {transform_indices = @transform_3, window_bounds = array<i64: 14, 32>}, {pipeline_mode = #tpu.pipeline_mode<synchronous>, transform_indices = @transform_4, window_bounds = array<i64: 1, 32>}, {pipeline_mode = #tpu.pipeline_mode<synchronous>, transform_indices = @transform_5, window_bounds = array<i64: 1, 32>}, {transform_indices = @transform_6, window_bounds = array<i64: 14, 32>}]} {
    %c0 = arith.constant 0 : index
    %c0_0 = arith.constant 0 : index
    %0 = vector.load %arg1[%c0, %c0_0] : memref<14x96xbf16, #tpu.memory_space<vmem>>, vector<14x96xbf16>
    %c0_1 = arith.constant 0 : index
    %c0_2 = arith.constant 0 : index
    %1 = vector.load %arg2[%c0_1, %c0_2] : memref<96x32xbf16, #tpu.memory_space<vmem>>, vector<96x32xbf16>
    %cst = arith.constant dense<0.000000e+00> : vector<14x32xf32>
    %2 = tpu.matmul %0, %1, %cst {dimension_numbers = #tpu.dot_dimension_numbers<[1], [0], [0], [1], [0, 0, 1, 1], [], []>} : vector<14x96xbf16>, vector<96x32xbf16>, vector<14x32xf32> -> vector<14x32xf32>
    %c0_3 = arith.constant 0 : index
    %c0_4 = arith.constant 0 : index
    %3 = vector.load %arg3[%c0_3, %c0_4] : memref<1x32xf32, #tpu.memory_space<vmem>>, vector<1x32xf32>
    %4 = vector.broadcast %3 : vector<1x32xf32> to vector<14x32xf32>
    %5 = arith.addf %2, %4 : vector<14x32xf32>
    %cst_5 = arith.constant 5.65685415 : f32
    %6 = vector.broadcast %cst_5 : f32 to vector<14x32xf32>
    %7 = arith.mulf %5, %6 : vector<14x32xf32>
    %c0_6 = arith.constant 0 : index
    %c0_7 = arith.constant 0 : index
    %8 = vector.load %arg4[%c0_6, %c0_7] : memref<14x32xf32, #tpu.memory_space<vmem>>, vector<14x32xf32>
    %9 = arith.addf %7, %8 : vector<14x32xf32>
    %cst_8 = arith.constant dense<0.000000e+00> : vector<14xf32>
    %10 = vector.multi_reduction <add>, %9, %cst_8 [1] : vector<14x32xf32> to vector<14xf32>
    %11 = vector.shape_cast %10 : vector<14xf32> to vector<14x1xf32>
    %cst_9 = arith.constant 3.200000e+01 : f32
    %12 = vector.broadcast %cst_9 : f32 to vector<14x1xf32>
    %13 = arith.divf %11, %12 : vector<14x1xf32>
    %14 = vector.broadcast %13 : vector<14x1xf32> to vector<14x32xf32>
    %15 = arith.subf %9, %14 : vector<14x32xf32>
    %16 = arith.mulf %15, %15 : vector<14x32xf32>
    %cst_10 = arith.constant dense<0.000000e+00> : vector<14xf32>
    %17 = vector.multi_reduction <add>, %16, %cst_10 [1] : vector<14x32xf32> to vector<14xf32>
    %18 = vector.shape_cast %17 : vector<14xf32> to vector<14x1xf32>
    %cst_11 = arith.constant 3.200000e+01 : f32
    %19 = vector.broadcast %cst_11 : f32 to vector<14x1xf32>
    %20 = arith.divf %18, %19 : vector<14x1xf32>
    %21 = vector.broadcast %13 : vector<14x1xf32> to vector<14x32xf32>
    %22 = arith.subf %9, %21 : vector<14x32xf32>
    %cst_12 = arith.constant 9.99999996E-13 : f32
    %23 = vector.broadcast %cst_12 : f32 to vector<14x1xf32>
    %24 = arith.addf %20, %23 : vector<14x1xf32>
    %25 = math.rsqrt %24 : vector<14x1xf32>
    %26 = vector.broadcast %25 : vector<14x1xf32> to vector<14x32xf32>
    %27 = arith.mulf %22, %26 : vector<14x32xf32>
    %c0_13 = arith.constant 0 : index
    %c0_14 = arith.constant 0 : index
    %28 = vector.load %arg5[%c0_13, %c0_14] : memref<1x32xf32, #tpu.memory_space<vmem>>, vector<1x32xf32>
    %29 = vector.broadcast %28 : vector<1x32xf32> to vector<14x32xf32>
    %30 = arith.mulf %27, %29 : vector<14x32xf32>
    %c0_15 = arith.constant 0 : index
    %c0_16 = arith.constant 0 : index
    %31 = vector.load %arg6[%c0_15, %c0_16] : memref<1x32xf32, #tpu.memory_space<vmem>>, vector<1x32xf32>
    %32 = vector.broadcast %31 : vector<1x32xf32> to vector<14x32xf32>
    %33 = arith.addf %30, %32 : vector<14x32xf32>
    %c0_17 = arith.constant 0 : index
    %c0_18 = arith.constant 0 : index
    %34 = vector.load %arg7[%c0_17, %c0_18] : memref<14x32xf32, #tpu.memory_space<vmem>>, vector<14x32xf32>
    tpu.vector_store %arg7[%c0_17, %c0_18], %33 {strides = array<i32>} : memref<14x32xf32, #tpu.memory_space<vmem>>, vector<14x32xf32>,
    return
  }
  func.func @transform_0(%arg0: i32) -> (i32, i32) {
    %c0_i32 = arith.constant 0 : i32
    %c0_i32_0 = arith.constant 0 : i32
    return %arg0, %c0_i32 : i32, i32
  }
  func.func @transform_1(%arg0: i32) -> (i32, i32) {
    %c0_i32 = arith.constant 0 : i32
    %c0_i32_0 = arith.constant 0 : i32
    %c0_i32_1 = arith.constant 0 : i32
    return %c0_i32, %c0_i32_0 : i32, i32
  }
  func.func @transform_2(%arg0: i32) -> (i32, i32) {
    %c0_i32 = arith.constant 0 : i32
    %c0_i32_0 = arith.constant 0 : i32
    %c0_i32_1 = arith.constant 0 : i32
    return %c0_i32, %c0_i32_0 : i32, i32
  }
  func.func @transform_3(%arg0: i32) -> (i32, i32) {
    %c0_i32 = arith.constant 0 : i32
    %c0_i32_0 = arith.constant 0 : i32
    return %arg0, %c0_i32 : i32, i32
  }
  func.func @transform_4(%arg0: i32) -> (i32, i32) {
    %c0_i32 = arith.constant 0 : i32
    %c0_i32_0 = arith.constant 0 : i32
    %c0_i32_1 = arith.constant 0 : i32
    return %c0_i32, %c0_i32_0 : i32, i32
  }
  func.func @transform_5(%arg0: i32) -> (i32, i32) {
    %c0_i32 = arith.constant 0 : i32
    %c0_i32_0 = arith.constant 0 : i32
    %c0_i32_1 = arith.constant 0 : i32
    return %c0_i32, %c0_i32_0 : i32, i32
  }
  func.func @transform_6(%arg0: i32) -> (i32, i32) {
    %c0_i32 = arith.constant 0 : i32
    %c0_i32_0 = arith.constant 0 : i32
    return %arg0, %c0_i32 : i32, i32
  }
}

</mosaic_0001>

<llo_original>
// kernel: base_encoder_forward.3
$region0: #{base_encoder_forward.3}
  #allocation0 [shape = 'u32[]', space=smem, size = 0x4, offset = 0x4, fixed_abs, tag = 'smem constant byte address 0x4 - core index']
  #allocation1 [shape = 'u32[72,128]{1,0:T(1,128)}', space=vmem, size = 0x9000, scoped, tag = 'internal scratch']
  %s0 = inlined_call_operand.vmem [shape: f32[210,9], index: 0, kind: input, shape index: {}]
  %s1 = inlined_call_operand.vmem [shape: f32[9,32], index: 1, kind: input, shape index: {}]
  %s2 = inlined_call_operand.vmem [shape: f32[1,32], index: 2, kind: input, shape index: {}]
  %s3 = inlined_call_operand.vmem [shape: bf16[210,32], index: 3, kind: output, shape index: {}]
  %s4 = sld [smem:[#allocation0]]
  $region22: #{base_encoder_forward.3} parent=0
    _
  %s6 = ssub.s32 1, %s4
  %s7 = scalar_select 0, %s6, %s4
  // Predicated region
  $region2: #{base_encoder_forward.3} parent=0 // pred_check
    _
  $region3: #{base_encoder_forward.3} parent=0 // pred_check_branch
    %9 = sbr.rel (0) target = $region5
  $region4: #{base_encoder_forward.3} parent=0 // pred_region
    _
  $region5: #{base_encoder_forward.3} parent=0 // pred_fallthru
    _
  // Predicated region
  $region6: #{base_encoder_forward.3} parent=0 // pred_check
    _
  $region7: #{base_encoder_forward.3} parent=0 // pred_check_branch
    %11 = sbr.rel (0) target = $region9
  $region8: #{base_encoder_forward.3} parent=0 // pred_region
    _
  $region9: #{base_encoder_forward.3} parent=0 // pred_fallthru
    _
  // Predicated region
  $region10: #{base_encoder_forward.3} parent=0 // pred_check
    _
  $region11: #{base_encoder_forward.3} parent=0 // pred_check_branch
    %13 = sbr.rel (0) target = $region13
  $region12: #{base_encoder_forward.3} parent=0 // pred_region
    _
  $region13: #{base_encoder_forward.3} parent=0 // pred_fallthru
    _
  %v14 = vld [vmem:[%s0] sm:$0xff]
  %v15 = vld [vmem:[%s0 + $0x8] sm:$0xff]
  %v16 = vld [vmem:[%s0 + $0x10] sm:$0xff]
  %v17 = vld [vmem:[%s0 + $0x18] sm:$0xff]
  %v18 = vld [vmem:[%s0 + $0x20] sm:$0xff]
  %v19 = vld [vmem:[%s0 + $0x28] sm:$0xff]
  %v20 = vld [vmem:[%s0 + $0x30] sm:$0xff]
  %v21 = vld [vmem:[%s0 + $0x38] sm:$0xff]
  %v22 = vld [vmem:[%s0 + $0x40] sm:$0xff]
  %v23 = vld [vmem:[%s0 + $0x48] sm:$0xff]
  %v24 = vld [vmem:[%s0 + $0x50] sm:$0xff]
  %v25 = vld [vmem:[%s0 + $0x58] sm:$0xff]
  %v26 = vld [vmem:[%s0 + $0x60] sm:$0xff]
  %v27 = vld [vmem:[%s0 + $0x68] sm:$0xff]
  %v28 = vld [vmem:[%s0 + $0x70] sm:$0xff]
  %v29 = vld [vmem:[%s0 + $0x78] sm:$0xff]
  %v30 = vld [vmem:[%s0 + $0x80] sm:$0xff]
  %v31 = vld [vmem:[%s0 + $0x88] sm:$0xff]
  %v32 = vld [vmem:[%s0 + $0x90] sm:$0xff]
  %v33 = vld [vmem:[%s0 + $0x98] sm:$0xff]
  %v34 = vld [vmem:[%s0 + $0xa0] sm:$0xff]
  %v35 = vld [vmem:[%s0 + $0xa8] sm:$0xff]
  %v36 = vld [vmem:[%s0 + $0xb0] sm:$0xff]
  %v37 = vld [vmem:[%s0 + $0xb8] sm:$0xff]
  %v38 = vld [vmem:[%s0 + $0xc0] sm:$0xff]
  %v39 = vld [vmem:[%s0 + $0xc8] sm:$0xff]
  %v40 = vld [vmem:[%s0 + $0xd0] sm:$0x3]
  %v41 = vld [vmem:[%s1] sm:$0xff]
  %v42 = vld [vmem:[%s1 + $0x8] sm:$0x1]
  %44 = vset.pattern.permute.xlu0 0
  %45 = vperm.xlu0 %44, %v14
  %v46 = vpop.permute.xlu0 %45
  %49 = vset.pattern.permute.xlu0 0
  %50 = vperm.xlu0 %49, %v15
  %v51 = vpop.permute.xlu0 %50
  %54 = vset.pattern.permute.xlu0 0
  %55 = vperm.xlu0 %54, %v16
  %v56 = vpop.permute.xlu0 %55
  %59 = vset.pattern.permute.xlu0 0
  %60 = vperm.xlu0 %59, %v17
  %v61 = vpop.permute.xlu0 %60
  %64 = vset.pattern.permute.xlu0 0
  %65 = vperm.xlu0 %64, %v18
  %v66 = vpop.permute.xlu0 %65
  %69 = vset.pattern.permute.xlu0 0
  %70 = vperm.xlu0 %69, %v19
  %v71 = vpop.permute.xlu0 %70
  %74 = vset.pattern.permute.xlu0 0
  %75 = vperm.xlu0 %74, %v20
  %v76 = vpop.permute.xlu0 %75
  %79 = vset.pattern.permute.xlu0 0
  %80 = vperm.xlu0 %79, %v21
  %v81 = vpop.permute.xlu0 %80
  %84 = vset.pattern.permute.xlu0 0
  %85 = vperm.xlu0 %84, %v22
  %v86 = vpop.permute.xlu0 %85
  %89 = vset.pattern.permute.xlu0 0
  %90 = vperm.xlu0 %89, %v23
  %v91 = vpop.permute.xlu0 %90
  %94 = vset.pattern.permute.xlu0 0
  %95 = vperm.xlu0 %94, %v24
  %v96 = vpop.permute.xlu0 %95
  %99 = vset.pattern.permute.xlu0 0
  %100 = vperm.xlu0 %99, %v25
  %v101 = vpop.permute.xlu0 %100
  %104 = vset.pattern.permute.xlu0 0
  %105 = vperm.xlu0 %104, %v26
  %v106 = vpop.permute.xlu0 %105
  %109 = vset.pattern.permute.xlu0 0
  %110 = vperm.xlu0 %109, %v27
  %v111 = vpop.permute.xlu0 %110
  %114 = vset.pattern.permute.xlu0 0
  %115 = vperm.xlu0 %114, %v28
  %v116 = vpop.permute.xlu0 %115
  %119 = vset.pattern.permute.xlu0 0
  %120 = vperm.xlu0 %119, %v29
  %v121 = vpop.permute.xlu0 %120
  %124 = vset.pattern.permute.xlu0 0
  %125 = vperm.xlu0 %124, %v30
  %v126 = vpop.permute.xlu0 %125
  %129 = vset.pattern.permute.xlu0 0
  %130 = vperm.xlu0 %129, %v31
  %v131 = vpop.permute.xlu0 %130
  %134 = vset.pattern.permute.xlu0 0
  %135 = vperm.xlu0 %134, %v32
  %v136 = vpop.permute.xlu0 %135
  %139 = vset.pattern.permute.xlu0 0
  %140 = vperm.xlu0 %139, %v33
  %v141 = vpop.permute.xlu0 %140
  %144 = vset.pattern.permute.xlu0 0
  %145 = vperm.xlu0 %144, %v34
  %v146 = vpop.permute.xlu0 %145
  %149 = vset.pattern.permute.xlu0 0
  %150 = vperm.xlu0 %149, %v35
  %v151 = vpop.permute.xlu0 %150
  %154 = vset.pattern.permute.xlu0 0
  %155 = vperm.xlu0 %154, %v36
  %v156 = vpop.permute.xlu0 %155
  %159 = vset.pattern.permute.xlu0 0
  %160 = vperm.xlu0 %159, %v37
  %v161 = vpop.permute.xlu0 %160
  %164 = vset.pattern.permute.xlu0 0
  %165 = vperm.xlu0 %164, %v38
  %v166 = vpop.permute.xlu0 %165
  %169 = vset.pattern.permute.xlu0 0
  %170 = vperm.xlu0 %169, %v39
  %v171 = vpop.permute.xlu0 %170
  %174 = vset.pattern.permute.xlu0 0
  %175 = vperm.xlu0 %174, %v40
  %v176 = vpop.permute.xlu0 %175
  %v178 = vperm.slane %v41, 0
  %v179 = vmul.f32 %v46, %v178
  %v180 = vmul.f32 %v51, %v178
  %v181 = vmul.f32 %v56, %v178
  %v182 = vmul.f32 %v61, %v178
  %v183 = vmul.f32 %v66, %v178
  %v184 = vmul.f32 %v71, %v178
  %v185 = vmul.f32 %v76, %v178
  %v186 = vmul.f32 %v81, %v178
  %v187 = vmul.f32 %v86, %v178
  %v188 = vmul.f32 %v91, %v178
  %v189 = vmul.f32 %v96, %v178
  %v190 = vmul.f32 %v101, %v178
  %v191 = vmul.f32 %v106, %v178
  %v192 = vmul.f32 %v111, %v178
  %v193 = vmul.f32 %v116, %v178
  %v194 = vmul.f32 %v121, %v178
  %v195 = vmul.f32 %v126, %v178
  %v196 = vmul.f32 %v131, %v178
  %v197 = vmul.f32 %v136, %v178
  %v198 = vmul.f32 %v141, %v178
  %v199 = vmul.f32 %v146, %v178
  %v200 = vmul.f32 %v151, %v178
  %v201 = vmul.f32 %v156, %v178
  %v202 = vmul.f32 %v161, %v178
  %v203 = vmul.f32 %v166, %v178
  %v204 = vmul.f32 %v171, %v178
  %v205 = vmul.f32 %v176, %v178
  %v206 = vadd.f32 %v179, 0.0
  %v207 = vadd.f32 %v180, 0.0
  %v208 = vadd.f32 %v181, 0.0
  %v209 = vadd.f32 %v182, 0.0
  %v210 = vadd.f32 %v183, 0.0
  %v211 = vadd.f32 %v184, 0.0
  %v212 = vadd.f32 %v185, 0.0
  %v213 = vadd.f32 %v186, 0.0
  %v214 = vadd.f32 %v187, 0.0
  %v215 = vadd.f32 %v188, 0.0
  %v216 = vadd.f32 %v189, 0.0
  %v217 = vadd.f32 %v190, 0.0
  %v218 = vadd.f32 %v191, 0.0
  %v219 = vadd.f32 %v192, 0.0
  %v220 = vadd.f32 %v193, 0.0
  %v221 = vadd.f32 %v194, 0.0
  %v222 = vadd.f32 %v195, 0.0
  %v223 = vadd.f32 %v196, 0.0
  %v224 = vadd.f32 %v197, 0.0
  %v225 = vadd.f32 %v198, 0.0
  %v226 = vadd.f32 %v199, 0.0
  %v227 = vadd.f32 %v200, 0.0
  %v228 = vadd.f32 %v201, 0.0
  %v229 = vadd.f32 %v202, 0.0
  %v230 = vadd.f32 %v203, 0.0
  %v231 = vadd.f32 %v204, 0.0
  %v232 = vadd.f32 %v205, 0.0
  %233 = vset.pattern.permute.xlu0 1
  %234 = vperm.xlu0 %233, %v14
  %v235 = vpop.permute.xlu0 %234
  %237 = vset.pattern.permute.xlu0 1
  %238 = vperm.xlu0 %237, %v15
  %v239 = vpop.permute.xlu0 %238
  %241 = vset.pattern.permute.xlu0 1
  %242 = vperm.xlu0 %241, %v16
  %v243 = vpop.permute.xlu0 %242
  %245 = vset.pattern.permute.xlu0 1
  %246 = vperm.xlu0 %245, %v17
  %v247 = vpop.permute.xlu0 %246
  %249 = vset.pattern.permute.xlu0 1
  %250 = vperm.xlu0 %249, %v18
  %v251 = vpop.permute.xlu0 %250
  %253 = vset.pattern.permute.xlu0 1
  %254 = vperm.xlu0 %253, %v19
  %v255 = vpop.permute.xlu0 %254
  %257 = vset.pattern.permute.xlu0 1
  %258 = vperm.xlu0 %257, %v20
  %v259 = vpop.permute.xlu0 %258
  %261 = vset.pattern.permute.xlu0 1
  %262 = vperm.xlu0 %261, %v21
  %v263 = vpop.permute.xlu0 %262
  %265 = vset.pattern.permute.xlu0 1
  %266 = vperm.xlu0 %265, %v22
  %v267 = vpop.permute.xlu0 %266
  %269 = vset.pattern.permute.xlu0 1
  %270 = vperm.xlu0 %269, %v23
  %v271 = vpop.permute.xlu0 %270
  %273 = vset.pattern.permute.xlu0 1
  %274 = vperm.xlu0 %273, %v24
  %v275 = vpop.permute.xlu0 %274
  %277 = vset.pattern.permute.xlu0 1
  %278 = vperm.xlu0 %277, %v25
  %v279 = vpop.permute.xlu0 %278
  %281 = vset.pattern.permute.xlu0 1
  %282 = vperm.xlu0 %281, %v26
  %v283 = vpop.permute.xlu0 %282
  %285 = vset.pattern.permute.xlu0 1
  %286 = vperm.xlu0 %285, %v27
  %v287 = vpop.permute.xlu0 %286
  %289 = vset.pattern.permute.xlu0 1
  %290 = vperm.xlu0 %289, %v28
  %v291 = vpop.permute.xlu0 %290
  %293 = vset.pattern.permute.xlu0 1
  %294 = vperm.xlu0 %293, %v29
  %v295 = vpop.permute.xlu0 %294
  %297 = vset.pattern.permute.xlu0 1
  %298 = vperm.xlu0 %297, %v30
  %v299 = vpop.permute.xlu0 %298
  %301 = vset.pattern.permute.xlu0 1
  %302 = vperm.xlu0 %301, %v31
  %v303 = vpop.permute.xlu0 %302
  %305 = vset.pattern.permute.xlu0 1
  %306 = vperm.xlu0 %305, %v32
  %v307 = vpop.permute.xlu0 %306
  %309 = vset.pattern.permute.xlu0 1
  %310 = vperm.xlu0 %309, %v33
  %v311 = vpop.permute.xlu0 %310
  %313 = vset.pattern.permute.xlu0 1
  %314 = vperm.xlu0 %313, %v34
  %v315 = vpop.permute.xlu0 %314
  %317 = vset.pattern.permute.xlu0 1
  %318 = vperm.xlu0 %317, %v35
  %v319 = vpop.permute.xlu0 %318
  %321 = vset.pattern.permute.xlu0 1
  %322 = vperm.xlu0 %321, %v36
  %v323 = vpop.permute.xlu0 %322
  %325 = vset.pattern.permute.xlu0 1
  %326 = vperm.xlu0 %325, %v37
  %v327 = vpop.permute.xlu0 %326
  %329 = vset.pattern.permute.xlu0 1
  %330 = vperm.xlu0 %329, %v38
  %v331 = vpop.permute.xlu0 %330
  %333 = vset.pattern.permute.xlu0 1
  %334 = vperm.xlu0 %333, %v39
  %v335 = vpop.permute.xlu0 %334
  %337 = vset.pattern.permute.xlu0 1
  %338 = vperm.xlu0 %337, %v40
  %v339 = vpop.permute.xlu0 %338
  %v341 = vperm.slane %v41, 1
  %v342 = vmul.f32 %v235, %v341
  %v343 = vmul.f32 %v239, %v341
  %v344 = vmul.f32 %v243, %v341
  %v345 = vmul.f32 %v247, %v341
  %v346 = vmul.f32 %v251, %v341
  %v347 = vmul.f32 %v255, %v341
  %v348 = vmul.f32 %v259, %v341
  %v349 = vmul.f32 %v263, %v341
  %v350 = vmul.f32 %v267, %v341
  %v351 = vmul.f32 %v271, %v341
  %v352 = vmul.f32 %v275, %v341
  %v353 = vmul.f32 %v279, %v341
  %v354 = vmul.f32 %v283, %v341
  %v355 = vmul.f32 %v287, %v341
  %v356 = vmul.f32 %v291, %v341
  %v357 = vmul.f32 %v295, %v341
  %v358 = vmul.f32 %v299, %v341
  %v359 = vmul.f32 %v303, %v341
  %v360 = vmul.f32 %v307, %v341
  %v361 = vmul.f32 %v311, %v341
  %v362 = vmul.f32 %v315, %v341
  %v363 = vmul.f32 %v319, %v341
  %v364 = vmul.f32 %v323, %v341
  %v365 = vmul.f32 %v327, %v341
  %v366 = vmul.f32 %v331, %v341
  %v367 = vmul.f32 %v335, %v341
  %v368 = vmul.f32 %v339, %v341
  %v369 = vadd.f32 %v206, %v342
  %v370 = vadd.f32 %v207, %v343
  %v371 = vadd.f32 %v208, %v344
  %v372 = vadd.f32 %v209, %v345
  %v373 = vadd.f32 %v210, %v346
  %v374 = vadd.f32 %v211, %v347
  %v375 = vadd.f32 %v212, %v348
  %v376 = vadd.f32 %v213, %v349
  %v377 = vadd.f32 %v214, %v350
  %v378 = vadd.f32 %v215, %v351
  %v379 = vadd.f32 %v216, %v352
  %v380 = vadd.f32 %v217, %v353
  %v381 = vadd.f32 %v218, %v354
  %v382 = vadd.f32 %v219, %v355
  %v383 = vadd.f32 %v220, %v356
  %v384 = vadd.f32 %v221, %v357
  %v385 = vadd.f32 %v222, %v358
  %v386 = vadd.f32 %v223, %v359
  %v387 = vadd.f32 %v224, %v360
  %v388 = vadd.f32 %v225, %v361
  %v389 = vadd.f32 %v226, %v362
  %v390 = vadd.f32 %v227, %v363
  %v391 = vadd.f32 %v228, %v364
  %v392 = vadd.f32 %v229, %v365
  %v393 = vadd.f32 %v230, %v366
  %v394 = vadd.f32 %v231, %v367
  %v395 = vadd.f32 %v232, %v368
  %396 = vset.pattern.permute.xlu0 2
  %397 = vperm.xlu0 %396, %v14
  %v398 = vpop.permute.xlu0 %397
  %400 = vset.pattern.permute.xlu0 2
  %401 = vperm.xlu0 %400, %v15
  %v402 = vpop.permute.xlu0 %401
  %404 = vset.pattern.permute.xlu0 2
  %405 = vperm.xlu0 %404, %v16
  %v406 = vpop.permute.xlu0 %405
  %408 = vset.pattern.permute.xlu0 2
  %409 = vperm.xlu0 %408, %v17
  %v410 = vpop.permute.xlu0 %409
  %412 = vset.pattern.permute.xlu0 2
  %413 = vperm.xlu0 %412, %v18
  %v414 = vpop.permute.xlu0 %413
  %416 = vset.pattern.permute.xlu0 2
  %417 = vperm.xlu0 %416, %v19
  %v418 = vpop.permute.xlu0 %417
  %420 = vset.pattern.permute.xlu0 2
  %421 = vperm.xlu0 %420, %v20
  %v422 = vpop.permute.xlu0 %421
  %424 = vset.pattern.permute.xlu0 2
  %425 = vperm.xlu0 %424, %v21
  %v426 = vpop.permute.xlu0 %425
  %428 = vset.pattern.permute.xlu0 2
  %429 = vperm.xlu0 %428, %v22
  %v430 = vpop.permute.xlu0 %429
  %432 = vset.pattern.permute.xlu0 2
  %433 = vperm.xlu0 %432, %v23
  %v434 = vpop.permute.xlu0 %433
  %436 = vset.pattern.permute.xlu0 2
  %437 = vperm.xlu0 %436, %v24
  %v438 = vpop.permute.xlu0 %437
  %440 = vset.pattern.permute.xlu0 2
  %441 = vperm.xlu0 %440, %v25
  %v442 = vpop.permute.xlu0 %441
  %444 = vset.pattern.permute.xlu0 2
  %445 = vperm.xlu0 %444, %v26
  %v446 = vpop.permute.xlu0 %445
  %448 = vset.pattern.permute.xlu0 2
  %449 = vperm.xlu0 %448, %v27
  %v450 = vpop.permute.xlu0 %449
  %452 = vset.pattern.permute.xlu0 2
  %453 = vperm.xlu0 %452, %v28
  %v454 = vpop.permute.xlu0 %453
  %456 = vset.pattern.permute.xlu0 2
  %457 = vperm.xlu0 %456, %v29
  %v458 = vpop.permute.xlu0 %457
  %460 = vset.pattern.permute.xlu0 2
  %461 = vperm.xlu0 %460, %v30
  %v462 = vpop.permute.xlu0 %461
  %464 = vset.pattern.permute.xlu0 2
  %465 = vperm.xlu0 %464, %v31
  %v466 = vpop.permute.xlu0 %465
  %468 = vset.pattern.permute.xlu0 2
  %469 = vperm.xlu0 %468, %v32
  %v470 = vpop.permute.xlu0 %469
  %472 = vset.pattern.permute.xlu0 2
  %473 = vperm.xlu0 %472, %v33
  %v474 = vpop.permute.xlu0 %473
  %476 = vset.pattern.permute.xlu0 2
  %477 = vperm.xlu0 %476, %v34
  %v478 = vpop.permute.xlu0 %477
  %480 = vset.pattern.permute.xlu0 2
  %481 = vperm.xlu0 %480, %v35
  %v482 = vpop.permute.xlu0 %481
  %484 = vset.pattern.permute.xlu0 2
  %485 = vperm.xlu0 %484, %v36
  %v486 = vpop.permute.xlu0 %485
  %488 = vset.pattern.permute.xlu0 2
  %489 = vperm.xlu0 %488, %v37
  %v490 = vpop.permute.xlu0 %489
  %492 = vset.pattern.permute.xlu0 2
  %493 = vperm.xlu0 %492, %v38
  %v494 = vpop.permute.xlu0 %493
  %496 = vset.pattern.permute.xlu0 2
  %497 = vperm.xlu0 %496, %v39
  %v498 = vpop.permute.xlu0 %497
  %500 = vset.pattern.permute.xlu0 2
  %501 = vperm.xlu0 %500, %v40
  %v502 = vpop.permute.xlu0 %501
  %v504 = vperm.slane %v41, 2
  %v505 = vmul.f32 %v398, %v504
  %v506 = vmul.f32 %v402, %v504
  %v507 = vmul.f32 %v406, %v504
  %v508 = vmul.f32 %v410, %v504
  %v509 = vmul.f32 %v414, %v504
  %v510 = vmul.f32 %v418, %v504
  %v511 = vmul.f32 %v422, %v504
  %v512 = vmul.f32 %v426, %v504
  %v513 = vmul.f32 %v430, %v504
  %v514 = vmul.f32 %v434, %v504
  %v515 = vmul.f32 %v438, %v504
  %v516 = vmul.f32 %v442, %v504
  %v517 = vmul.f32 %v446, %v504
  %v518 = vmul.f32 %v450, %v504
  %v519 = vmul.f32 %v454, %v504
  %v520 = vmul.f32 %v458, %v504
  %v521 = vmul.f32 %v462, %v504
  %v522 = vmul.f32 %v466, %v504
  %v523 = vmul.f32 %v470, %v504
  %v524 = vmul.f32 %v474, %v504
  %v525 = vmul.f32 %v478, %v504
  %v526 = vmul.f32 %v482, %v504
  %v527 = vmul.f32 %v486, %v504
  %v528 = vmul.f32 %v490, %v504
  %v529 = vmul.f32 %v494, %v504
  %v530 = vmul.f32 %v498, %v504
  %v531 = vmul.f32 %v502, %v504
  %v532 = vadd.f32 %v369, %v505
  %v533 = vadd.f32 %v370, %v506
  %v534 = vadd.f32 %v371, %v507
  %v535 = vadd.f32 %v372, %v508
  %v536 = vadd.f32 %v373, %v509
  %v537 = vadd.f32 %v374, %v510
  %v538 = vadd.f32 %v375, %v511
  %v539 = vadd.f32 %v376, %v512
  %v540 = vadd.f32 %v377, %v513
  %v541 = vadd.f32 %v378, %v514
  %v542 = vadd.f32 %v379, %v515
  %v543 = vadd.f32 %v380, %v516
  %v544 = vadd.f32 %v381, %v517
  %v545 = vadd.f32 %v382, %v518
  %v546 = vadd.f32 %v383, %v519
  %v547 = vadd.f32 %v384, %v520
  %v548 = vadd.f32 %v385, %v521
  %v549 = vadd.f32 %v386, %v522
  %v550 = vadd.f32 %v387, %v523
  %v551 = vadd.f32 %v388, %v524
  %v552 = vadd.f32 %v389, %v525
  %v553 = vadd.f32 %v390, %v526
  %v554 = vadd.f32 %v391, %v527
  %v555 = vadd.f32 %v392, %v528
  %v556 = vadd.f32 %v393, %v529
  %v557 = vadd.f32 %v394, %v530
  %v558 = vadd.f32 %v395, %v531
  %559 = vset.pattern.permute.xlu0 3
  %560 = vperm.xlu0 %559, %v14
  %v561 = vpop.permute.xlu0 %560
  %563 = vset.pattern.permute.xlu0 3
  %564 = vperm.xlu0 %563, %v15
  %v565 = vpop.permute.xlu0 %564
  %567 = vset.pattern.permute.xlu0 3
  %568 = vperm.xlu0 %567, %v16
  %v569 = vpop.permute.xlu0 %568
  %571 = vset.pattern.permute.xlu0 3
  %572 = vperm.xlu0 %571, %v17
  %v573 = vpop.permute.xlu0 %572
  %575 = vset.pattern.permute.xlu0 3
  %576 = vperm.xlu0 %575, %v18
  %v577 = vpop.permute.xlu0 %576
  %579 = vset.pattern.permute.xlu0 3
  %580 = vperm.xlu0 %579, %v19
  %v581 = vpop.permute.xlu0 %580
  %583 = vset.pattern.permute.xlu0 3
  %584 = vperm.xlu0 %583, %v20
  %v585 = vpop.permute.xlu0 %584
  %587 = vset.pattern.permute.xlu0 3
  %588 = vperm.xlu0 %587, %v21
  %v589 = vpop.permute.xlu0 %588
  %591 = vset.pattern.permute.xlu0 3
  %592 = vperm.xlu0 %591, %v22
  %v593 = vpop.permute.xlu0 %592
  %595 = vset.pattern.permute.xlu0 3
  %596 = vperm.xlu0 %595, %v23
  %v597 = vpop.permute.xlu0 %596
  %599 = vset.pattern.permute.xlu0 3
  %600 = vperm.xlu0 %599, %v24
  %v601 = vpop.permute.xlu0 %600
  %603 = vset.pattern.permute.xlu0 3
  %604 = vperm.xlu0 %603, %v25
  %v605 = vpop.permute.xlu0 %604
  %607 = vset.pattern.permute.xlu0 3
  %608 = vperm.xlu0 %607, %v26
  %v609 = vpop.permute.xlu0 %608
  %611 = vset.pattern.permute.xlu0 3
  %612 = vperm.xlu0 %611, %v27
  %v613 = vpop.permute.xlu0 %612
  %615 = vset.pattern.permute.xlu0 3
  %616 = vperm.xlu0 %615, %v28
  %v617 = vpop.permute.xlu0 %616
  %619 = vset.pattern.permute.xlu0 3
  %620 = vperm.xlu0 %619, %v29
  %v621 = vpop.permute.xlu0 %620
  %623 = vset.pattern.permute.xlu0 3
  %624 = vperm.xlu0 %623, %v30
  %v625 = vpop.permute.xlu0 %624
  %627 = vset.pattern.permute.xlu0 3
  %628 = vperm.xlu0 %627, %v31
  %v629 = vpop.permute.xlu0 %628
  %631 = vset.pattern.permute.xlu0 3
  %632 = vperm.xlu0 %631, %v32
  %v633 = vpop.permute.xlu0 %632
  %635 = vset.pattern.permute.xlu0 3
  %636 = vperm.xlu0 %635, %v33
  %v637 = vpop.permute.xlu0 %636
  %639 = vset.pattern.permute.xlu0 3
  %640 = vperm.xlu0 %639, %v34
  %v641 = vpop.permute.xlu0 %640
  %643 = vset.pattern.permute.xlu0 3
  %644 = vperm.xlu0 %643, %v35
  %v645 = vpop.permute.xlu0 %644
  %647 = vset.pattern.permute.xlu0 3
  %648 = vperm.xlu0 %647, %v36
  %v649 = vpop.permute.xlu0 %648
  %651 = vset.pattern.permute.xlu0 3
  %652 = vperm.xlu0 %651, %v37
  %v653 = vpop.permute.xlu0 %652
  %655 = vset.pattern.permute.xlu0 3
  %656 = vperm.xlu0 %655, %v38
  %v657 = vpop.permute.xlu0 %656
  %659 = vset.pattern.permute.xlu0 3
  %660 = vperm.xlu0 %659, %v39
  %v661 = vpop.permute.xlu0 %660
  %663 = vset.pattern.permute.xlu0 3
  %664 = vperm.xlu0 %663, %v40
  %v665 = vpop.permute.xlu0 %664
  %v667 = vperm.slane %v41, 3
  %v668 = vmul.f32 %v561, %v667
  %v669 = vmul.f32 %v565, %v667
  %v670 = vmul.f32 %v569, %v667
  %v671 = vmul.f32 %v573, %v667
  %v672 = vmul.f32 %v577, %v667
  %v673 = vmul.f32 %v581, %v667
  %v674 = vmul.f32 %v585, %v667
  %v675 = vmul.f32 %v589, %v667
  %v676 = vmul.f32 %v593, %v667
  %v677 = vmul.f32 %v597, %v667
  %v678 = vmul.f32 %v601, %v667
  %v679 = vmul.f32 %v605, %v667
  %v680 = vmul.f32 %v609, %v667
  %v681 = vmul.f32 %v613, %v667
  %v682 = vmul.f32 %v617, %v667
  %v683 = vmul.f32 %v621, %v667
  %v684 = vmul.f32 %v625, %v667
  %v685 = vmul.f32 %v629, %v667
  %v686 = vmul.f32 %v633, %v667
  %v687 = vmul.f32 %v637, %v667
  %v688 = vmul.f32 %v641, %v667
  %v689 = vmul.f32 %v645, %v667
  %v690 = vmul.f32 %v649, %v667
  %v691 = vmul.f32 %v653, %v667
  %v692 = vmul.f32 %v657, %v667
  %v693 = vmul.f32 %v661, %v667
  %v694 = vmul.f32 %v665, %v667
  %v695 = vadd.f32 %v532, %v668
  %v696 = vadd.f32 %v533, %v669
  %v697 = vadd.f32 %v534, %v670
  %v698 = vadd.f32 %v535, %v671
  %v699 = vadd.f32 %v536, %v672
  %v700 = vadd.f32 %v537, %v673
  %v701 = vadd.f32 %v538, %v674
  %v702 = vadd.f32 %v539, %v675
  %v703 = vadd.f32 %v540, %v676
  %v704 = vadd.f32 %v541, %v677
  %v705 = vadd.f32 %v542, %v678
  %v706 = vadd.f32 %v543, %v679
  %v707 = vadd.f32 %v544, %v680
  %v708 = vadd.f32 %v545, %v681
  %v709 = vadd.f32 %v546, %v682
  %v710 = vadd.f32 %v547, %v683
  %v711 = vadd.f32 %v548, %v684
  %v712 = vadd.f32 %v549, %v685
  %v713 = vadd.f32 %v550, %v686
  %v714 = vadd.f32 %v551, %v687
  %v715 = vadd.f32 %v552, %v688
  %v716 = vadd.f32 %v553, %v689
  %v717 = vadd.f32 %v554, %v690
  %v718 = vadd.f32 %v555, %v691
  %v719 = vadd.f32 %v556, %v692
  %v720 = vadd.f32 %v557, %v693
  %v721 = vadd.f32 %v558, %v694
  %722 = vset.pattern.permute.xlu0 4
  %723 = vperm.xlu0 %722, %v14
  %v724 = vpop.permute.xlu0 %723
  %726 = vset.pattern.permute.xlu0 4
  %727 = vperm.xlu0 %726, %v15
  %v728 = vpop.permute.xlu0 %727
  %730 = vset.pattern.permute.xlu0 4
  %731 = vperm.xlu0 %730, %v16
  %v732 = vpop.permute.xlu0 %731
  %734 = vset.pattern.permute.xlu0 4
  %735 = vperm.xlu0 %734, %v17
  %v736 = vpop.permute.xlu0 %735
  %738 = vset.pattern.permute.xlu0 4
  %739 = vperm.xlu0 %738, %v18
  %v740 = vpop.permute.xlu0 %739
  %742 = vset.pattern.permute.xlu0 4
  %743 = vperm.xlu0 %742, %v19
  %v744 = vpop.permute.xlu0 %743
  %746 = vset.pattern.permute.xlu0 4
  %747 = vperm.xlu0 %746, %v20
  %v748 = vpop.permute.xlu0 %747
  %750 = vset.pattern.permute.xlu0 4
  %751 = vperm.xlu0 %750, %v21
  %v752 = vpop.permute.xlu0 %751
  %754 = vset.pattern.permute.xlu0 4
  %755 = vperm.xlu0 %754, %v22
  %v756 = vpop.permute.xlu0 %755
  %758 = vset.pattern.permute.xlu0 4
  %759 = vperm.xlu0 %758, %v23
  %v760 = vpop.permute.xlu0 %759
  %762 = vset.pattern.permute.xlu0 4
  %763 = vperm.xlu0 %762, %v24
  %v764 = vpop.permute.xlu0 %763
  %766 = vset.pattern.permute.xlu0 4
  %767 = vperm.xlu0 %766, %v25
  %v768 = vpop.permute.xlu0 %767
  %770 = vset.pattern.permute.xlu0 4
  %771 = vperm.xlu0 %770, %v26
  %v772 = vpop.permute.xlu0 %771
  %774 = vset.pattern.permute.xlu0 4
  %775 = vperm.xlu0 %774, %v27
  %v776 = vpop.permute.xlu0 %775
  %778 = vset.pattern.permute.xlu0 4
  %779 = vperm.xlu0 %778, %v28
  %v780 = vpop.permute.xlu0 %779
  %782 = vset.pattern.permute.xlu0 4
  %783 = vperm.xlu0 %782, %v29
  %v784 = vpop.permute.xlu0 %783
  %786 = vset.pattern.permute.xlu0 4
  %787 = vperm.xlu0 %786, %v30
  %v788 = vpop.permute.xlu0 %787
  %790 = vset.pattern.permute.xlu0 4
  %791 = vperm.xlu0 %790, %v31
  %v792 = vpop.permute.xlu0 %791
  %794 = vset.pattern.permute.xlu0 4
  %795 = vperm.xlu0 %794, %v32
  %v796 = vpop.permute.xlu0 %795
  %798 = vset.pattern.permute.xlu0 4
  %799 = vperm.xlu0 %798, %v33
  %v800 = vpop.permute.xlu0 %799
  %802 = vset.pattern.permute.xlu0 4
  %803 = vperm.xlu0 %802, %v34
  %v804 = vpop.permute.xlu0 %803
  %806 = vset.pattern.permute.xlu0 4
  %807 = vperm.xlu0 %806, %v35
  %v808 = vpop.permute.xlu0 %807
  %810 = vset.pattern.permute.xlu0 4
  %811 = vperm.xlu0 %810, %v36
  %v812 = vpop.permute.xlu0 %811
  %814 = vset.pattern.permute.xlu0 4
  %815 = vperm.xlu0 %814, %v37
  %v816 = vpop.permute.xlu0 %815
  %818 = vset.pattern.permute.xlu0 4
  %819 = vperm.xlu0 %818, %v38
  %v820 = vpop.permute.xlu0 %819
  %822 = vset.pattern.permute.xlu0 4
  %823 = vperm.xlu0 %822, %v39
  %v824 = vpop.permute.xlu0 %823
  %826 = vset.pattern.permute.xlu0 4
  %827 = vperm.xlu0 %826, %v40
  %v828 = vpop.permute.xlu0 %827
  %v830 = vperm.slane %v41, 4
  %v831 = vmul.f32 %v724, %v830
  %v832 = vmul.f32 %v728, %v830
  %v833 = vmul.f32 %v732, %v830
  %v834 = vmul.f32 %v736, %v830
  %v835 = vmul.f32 %v740, %v830
  %v836 = vmul.f32 %v744, %v830
  %v837 = vmul.f32 %v748, %v830
  %v838 = vmul.f32 %v752, %v830
  %v839 = vmul.f32 %v756, %v830
  %v840 = vmul.f32 %v760, %v830
  %v841 = vmul.f32 %v764, %v830
  %v842 = vmul.f32 %v768, %v830
  %v843 = vmul.f32 %v772, %v830
  %v844 = vmul.f32 %v776, %v830
  %v845 = vmul.f32 %v780, %v830
  %v846 = vmul.f32 %v784, %v830
  %v847 = vmul.f32 %v788, %v830
  %v848 = vmul.f32 %v792, %v830
  %v849 = vmul.f32 %v796, %v830
  %v850 = vmul.f32 %v800, %v830
  %v851 = vmul.f32 %v804, %v830
  %v852 = vmul.f32 %v808, %v830
  %v853 = vmul.f32 %v812, %v830
  %v854 = vmul.f32 %v816, %v830
  %v855 = vmul.f32 %v820, %v830
  %v856 = vmul.f32 %v824, %v830
  %v857 = vmul.f32 %v828, %v830
  %v858 = vadd.f32 %v695, %v831
  %v859 = vadd.f32 %v696, %v832
  %v860 = vadd.f32 %v697, %v833
  %v861 = vadd.f32 %v698, %v834
  %v862 = vadd.f32 %v699, %v835
  %v863 = vadd.f32 %v700, %v836
  %v864 = vadd.f32 %v701, %v837
  %v865 = vadd.f32 %v702, %v838
  %v866 = vadd.f32 %v703, %v839
  %v867 = vadd.f32 %v704, %v840
  %v868 = vadd.f32 %v705, %v841
  %v869 = vadd.f32 %v706, %v842
  %v870 = vadd.f32 %v707, %v843
  %v871 = vadd.f32 %v708, %v844
  %v872 = vadd.f32 %v709, %v845
  %v873 = vadd.f32 %v710, %v846
  %v874 = vadd.f32 %v711, %v847
  %v875 = vadd.f32 %v712, %v848
  %v876 = vadd.f32 %v713, %v849
  %v877 = vadd.f32 %v714, %v850
  %v878 = vadd.f32 %v715, %v851
  %v879 = vadd.f32 %v716, %v852
  %v880 = vadd.f32 %v717, %v853
  %v881 = vadd.f32 %v718, %v854
  %v882 = vadd.f32 %v719, %v855
  %v883 = vadd.f32 %v720, %v856
  %v884 = vadd.f32 %v721, %v857
  %885 = vset.pattern.permute.xlu0 5
  %886 = vperm.xlu0 %885, %v14
  %v887 = vpop.permute.xlu0 %886
  %889 = vset.pattern.permute.xlu0 5
  %890 = vperm.xlu0 %889, %v15
  %v891 = vpop.permute.xlu0 %890
  %893 = vset.pattern.permute.xlu0 5
  %894 = vperm.xlu0 %893, %v16
  %v895 = vpop.permute.xlu0 %894
  %897 = vset.pattern.permute.xlu0 5
  %898 = vperm.xlu0 %897, %v17
  %v899 = vpop.permute.xlu0 %898
  %901 = vset.pattern.permute.xlu0 5
  %902 = vperm.xlu0 %901, %v18
  %v903 = vpop.permute.xlu0 %902
  %905 = vset.pattern.permute.xlu0 5
  %906 = vperm.xlu0 %905, %v19
  %v907 = vpop.permute.xlu0 %906
  %909 = vset.pattern.permute.xlu0 5
  %910 = vperm.xlu0 %909, %v20
  %v911 = vpop.permute.xlu0 %910
  %913 = vset.pattern.permute.xlu0 5
  %914 = vperm.xlu0 %913, %v21
  %v915 = vpop.permute.xlu0 %914
  %917 = vset.pattern.permute.xlu0 5
  %918 = vperm.xlu0 %917, %v22
  %v919 = vpop.permute.xlu0 %918
  %921 = vset.pattern.permute.xlu0 5
  %922 = vperm.xlu0 %921, %v23
  %v923 = vpop.permute.xlu0 %922
  %925 = vset.pattern.permute.xlu0 5
  %926 = vperm.xlu0 %925, %v24
  %v927 = vpop.permute.xlu0 %926
  %929 = vset.pattern.permute.xlu0 5
  %930 = vperm.xlu0 %929, %v25
  %v931 = vpop.permute.xlu0 %930
  %933 = vset.pattern.permute.xlu0 5
  %934 = vperm.xlu0 %933, %v26
  %v935 = vpop.permute.xlu0 %934
  %937 = vset.pattern.permute.xlu0 5
  %938 = vperm.xlu0 %937, %v27
  %v939 = vpop.permute.xlu0 %938
  %941 = vset.pattern.permute.xlu0 5
  %942 = vperm.xlu0 %941, %v28
  %v943 = vpop.permute.xlu0 %942
  %945 = vset.pattern.permute.xlu0 5
  %946 = vperm.xlu0 %945, %v29
  %v947 = vpop.permute.xlu0 %946
  %949 = vset.pattern.permute.xlu0 5
  %950 = vperm.xlu0 %949, %v30
  %v951 = vpop.permute.xlu0 %950
  %953 = vset.pattern.permute.xlu0 5
  %954 = vperm.xlu0 %953, %v31
  %v955 = vpop.permute.xlu0 %954
  %957 = vset.pattern.permute.xlu0 5
  %958 = vperm.xlu0 %957, %v32
  %v959 = vpop.permute.xlu0 %958
  %961 = vset.pattern.permute.xlu0 5
  %962 = vperm.xlu0 %961, %v33
  %v963 = vpop.permute.xlu0 %962
  %965 = vset.pattern.permute.xlu0 5
  %966 = vperm.xlu0 %965, %v34
  %v967 = vpop.permute.xlu0 %966
  %969 = vset.pattern.permute.xlu0 5
  %970 = vperm.xlu0 %969, %v35
  %v971 = vpop.permute.xlu0 %970
  %973 = vset.pattern.permute.xlu0 5
  %974 = vperm.xlu0 %973, %v36
  %v975 = vpop.permute.xlu0 %974
  %977 = vset.pattern.permute.xlu0 5
  %978 = vperm.xlu0 %977, %v37
  %v979 = vpop.permute.xlu0 %978
  %981 = vset.pattern.permute.xlu0 5
  %982 = vperm.xlu0 %981, %v38
  %v983 = vpop.permute.xlu0 %982
  %985 = vset.pattern.permute.xlu0 5
  %986 = vperm.xlu0 %985, %v39
  %v987 = vpop.permute.xlu0 %986
  %989 = vset.pattern.permute.xlu0 5
  %990 = vperm.xlu0 %989, %v40
  %v991 = vpop.permute.xlu0 %990
  %v993 = vperm.slane %v41, 5
  %v994 = vmul.f32 %v887, %v993
  %v995 = vmul.f32 %v891, %v993
  %v996 = vmul.f32 %v895, %v993
  %v997 = vmul.f32 %v899, %v993
  %v998 = vmul.f32 %v903, %v993
  %v999 = vmul.f32 %v907, %v993
  %v1000 = vmul.f32 %v911, %v993
  %v1001 = vmul.f32 %v915, %v993
  %v1002 = vmul.f32 %v919, %v993
  %v1003 = vmul.f32 %v923, %v993
  %v1004 = vmul.f32 %v927, %v993
  %v1005 = vmul.f32 %v931, %v993
  %v1006 = vmul.f32 %v935, %v993
  %v1007 = vmul.f32 %v939, %v993
  %v1008 = vmul.f32 %v943, %v993
  %v1009 = vmul.f32 %v947, %v993
  %v1010 = vmul.f32 %v951, %v993
  %v1011 = vmul.f32 %v955, %v993
  %v1012 = vmul.f32 %v959, %v993
  %v1013 = vmul.f32 %v963, %v993
  %v1014 = vmul.f32 %v967, %v993
  %v1015 = vmul.f32 %v971, %v993
  %v1016 = vmul.f32 %v975, %v993
  %v1017 = vmul.f32 %v979, %v993
  %v1018 = vmul.f32 %v983, %v993
  %v1019 = vmul.f32 %v987, %v993
  %v1020 = vmul.f32 %v991, %v993
  %v1021 = vadd.f32 %v858, %v994
  %v1022 = vadd.f32 %v859, %v995
  %v1023 = vadd.f32 %v860, %v996
  %v1024 = vadd.f32 %v861, %v997
  %v1025 = vadd.f32 %v862, %v998
  %v1026 = vadd.f32 %v863, %v999
  %v1027 = vadd.f32 %v864, %v1000
  %v1028 = vadd.f32 %v865, %v1001
  %v1029 = vadd.f32 %v866, %v1002
  %v1030 = vadd.f32 %v867, %v1003
  %v1031 = vadd.f32 %v868, %v1004
  %v1032 = vadd.f32 %v869, %v1005
  %v1033 = vadd.f32 %v870, %v1006
  %v1034 = vadd.f32 %v871, %v1007
  %v1035 = vadd.f32 %v872, %v1008
  %v1036 = vadd.f32 %v873, %v1009
  %v1037 = vadd.f32 %v874, %v1010
  %v1038 = vadd.f32 %v875, %v1011
  %v1039 = vadd.f32 %v876, %v1012
  %v1040 = vadd.f32 %v877, %v1013
  %v1041 = vadd.f32 %v878, %v1014
  %v1042 = vadd.f32 %v879, %v1015
  %v1043 = vadd.f32 %v880, %v1016
  %v1044 = vadd.f32 %v881, %v1017
  %v1045 = vadd.f32 %v882, %v1018
  %v1046 = vadd.f32 %v883, %v1019
  %v1047 = vadd.f32 %v884, %v1020
  %1048 = vset.pattern.permute.xlu0 6
  %1049 = vperm.xlu0 %1048, %v14
  %v1050 = vpop.permute.xlu0 %1049
  %1052 = vset.pattern.permute.xlu0 6
  %1053 = vperm.xlu0 %1052, %v15
  %v1054 = vpop.permute.xlu0 %1053
  %1056 = vset.pattern.permute.xlu0 6
  %1057 = vperm.xlu0 %1056, %v16
  %v1058 = vpop.permute.xlu0 %1057
  %1060 = vset.pattern.permute.xlu0 6
  %1061 = vperm.xlu0 %1060, %v17
  %v1062 = vpop.permute.xlu0 %1061
  %1064 = vset.pattern.permute.xlu0 6
  %1065 = vperm.xlu0 %1064, %v18
  %v1066 = vpop.permute.xlu0 %1065
  %1068 = vset.pattern.permute.xlu0 6
  %1069 = vperm.xlu0 %1068, %v19
  %v1070 = vpop.permute.xlu0 %1069
  %1072 = vset.pattern.permute.xlu0 6
  %1073 = vperm.xlu0 %1072, %v20
  %v1074 = vpop.permute.xlu0 %1073
  %1076 = vset.pattern.permute.xlu0 6
  %1077 = vperm.xlu0 %1076, %v21
  %v1078 = vpop.permute.xlu0 %1077
  %1080 = vset.pattern.permute.xlu0 6
  %1081 = vperm.xlu0 %1080, %v22
  %v1082 = vpop.permute.xlu0 %1081
  %1084 = vset.pattern.permute.xlu0 6
  %1085 = vperm.xlu0 %1084, %v23
  %v1086 = vpop.permute.xlu0 %1085
  %1088 = vset.pattern.permute.xlu0 6
  %1089 = vperm.xlu0 %1088, %v24
  %v1090 = vpop.permute.xlu0 %1089
  %1092 = vset.pattern.permute.xlu0 6
  %1093 = vperm.xlu0 %1092, %v25
  %v1094 = vpop.permute.xlu0 %1093
  %1096 = vset.pattern.permute.xlu0 6
  %1097 = vperm.xlu0 %1096, %v26
  %v1098 = vpop.permute.xlu0 %1097
  %1100 = vset.pattern.permute.xlu0 6
  %1101 = vperm.xlu0 %1100, %v27
  %v1102 = vpop.permute.xlu0 %1101
  %1104 = vset.pattern.permute.xlu0 6
  %1105 = vperm.xlu0 %1104, %v28
  %v1106 = vpop.permute.xlu0 %1105
  %1108 = vset.pattern.permute.xlu0 6
  %1109 = vperm.xlu0 %1108, %v29
  %v1110 = vpop.permute.xlu0 %1109
  %1112 = vset.pattern.permute.xlu0 6
  %1113 = vperm.xlu0 %1112, %v30
  %v1114 = vpop.permute.xlu0 %1113
  %1116 = vset.pattern.permute.xlu0 6
  %1117 = vperm.xlu0 %1116, %v31
  %v1118 = vpop.permute.xlu0 %1117
  %1120 = vset.pattern.permute.xlu0 6
  %1121 = vperm.xlu0 %1120, %v32
  %v1122 = vpop.permute.xlu0 %1121
  %1124 = vset.pattern.permute.xlu0 6
  %1125 = vperm.xlu0 %1124, %v33
  %v1126 = vpop.permute.xlu0 %1125
  %1128 = vset.pattern.permute.xlu0 6
  %1129 = vperm.xlu0 %1128, %v34
  %v1130 = vpop.permute.xlu0 %1129
  %1132 = vset.pattern.permute.xlu0 6
  %1133 = vperm.xlu0 %1132, %v35
  %v1134 = vpop.permute.xlu0 %1133
  %1136 = vset.pattern.permute.xlu0 6
  %1137 = vperm.xlu0 %1136, %v36
  %v1138 = vpop.permute.xlu0 %1137
  %1140 = vset.pattern.permute.xlu0 6
  %1141 = vperm.xlu0 %1140, %v37
  %v1142 = vpop.permute.xlu0 %1141
  %1144 = vset.pattern.permute.xlu0 6
  %1145 = vperm.xlu0 %1144, %v38
  %v1146 = vpop.permute.xlu0 %1145
  %1148 = vset.pattern.permute.xlu0 6
  %1149 = vperm.xlu0 %1148, %v39
  %v1150 = vpop.permute.xlu0 %1149
  %1152 = vset.pattern.permute.xlu0 6
  %1153 = vperm.xlu0 %1152, %v40
  %v1154 = vpop.permute.xlu0 %1153
  %v1156 = vperm.slane %v41, 6
  %v1157 = vmul.f32 %v1050, %v1156
  %v1158 = vmul.f32 %v1054, %v1156
  %v1159 = vmul.f32 %v1058, %v1156
  %v1160 = vmul.f32 %v1062, %v1156
  %v1161 = vmul.f32 %v1066, %v1156
  %v1162 = vmul.f32 %v1070, %v1156
  %v1163 = vmul.f32 %v1074, %v1156
  %v1164 = vmul.f32 %v1078, %v1156
  %v1165 = vmul.f32 %v1082, %v1156
  %v1166 = vmul.f32 %v1086, %v1156
  %v1167 = vmul.f32 %v1090, %v1156
  %v1168 = vmul.f32 %v1094, %v1156
  %v1169 = vmul.f32 %v1098, %v1156
  %v1170 = vmul.f32 %v1102, %v1156
  %v1171 = vmul.f32 %v1106, %v1156
  %v1172 = vmul.f32 %v1110, %v1156
  %v1173 = vmul.f32 %v1114, %v1156
  %v1174 = vmul.f32 %v1118, %v1156
  %v1175 = vmul.f32 %v1122, %v1156
  %v1176 = vmul.f32 %v1126, %v1156
  %v1177 = vmul.f32 %v1130, %v1156
  %v1178 = vmul.f32 %v1134, %v1156
  %v1179 = vmul.f32 %v1138, %v1156
  %v1180 = vmul.f32 %v1142, %v1156
  %v1181 = vmul.f32 %v1146, %v1156
  %v1182 = vmul.f32 %v1150, %v1156
  %v1183 = vmul.f32 %v1154, %v1156
  %v1184 = vadd.f32 %v1021, %v1157
  %v1185 = vadd.f32 %v1022, %v1158
  %v1186 = vadd.f32 %v1023, %v1159
  %v1187 = vadd.f32 %v1024, %v1160
  %v1188 = vadd.f32 %v1025, %v1161
  %v1189 = vadd.f32 %v1026, %v1162
  %v1190 = vadd.f32 %v1027, %v1163
  %v1191 = vadd.f32 %v1028, %v1164
  %v1192 = vadd.f32 %v1029, %v1165
  %v1193 = vadd.f32 %v1030, %v1166
  %v1194 = vadd.f32 %v1031, %v1167
  %v1195 = vadd.f32 %v1032, %v1168
  %v1196 = vadd.f32 %v1033, %v1169
  %v1197 = vadd.f32 %v1034, %v1170
  %v1198 = vadd.f32 %v1035, %v1171
  %v1199 = vadd.f32 %v1036, %v1172
  %v1200 = vadd.f32 %v1037, %v1173
  %v1201 = vadd.f32 %v1038, %v1174
  %v1202 = vadd.f32 %v1039, %v1175
  %v1203 = vadd.f32 %v1040, %v1176
  %v1204 = vadd.f32 %v1041, %v1177
  %v1205 = vadd.f32 %v1042, %v1178
  %v1206 = vadd.f32 %v1043, %v1179
  %v1207 = vadd.f32 %v1044, %v1180
  %v1208 = vadd.f32 %v1045, %v1181
  %v1209 = vadd.f32 %v1046, %v1182
  %v1210 = vadd.f32 %v1047, %v1183
  %1211 = vset.pattern.permute.xlu0 7
  %1212 = vperm.xlu0 %1211, %v14
  %v1213 = vpop.permute.xlu0 %1212
  %1215 = vset.pattern.permute.xlu0 7
  %1216 = vperm.xlu0 %1215, %v15
  %v1217 = vpop.permute.xlu0 %1216
  %1219 = vset.pattern.permute.xlu0 7
  %1220 = vperm.xlu0 %1219, %v16
  %v1221 = vpop.permute.xlu0 %1220
  %1223 = vset.pattern.permute.xlu0 7
  %1224 = vperm.xlu0 %1223, %v17
  %v1225 = vpop.permute.xlu0 %1224
  %1227 = vset.pattern.permute.xlu0 7
  %1228 = vperm.xlu0 %1227, %v18
  %v1229 = vpop.permute.xlu0 %1228
  %1231 = vset.pattern.permute.xlu0 7
  %1232 = vperm.xlu0 %1231, %v19
  %v1233 = vpop.permute.xlu0 %1232
  %1235 = vset.pattern.permute.xlu0 7
  %1236 = vperm.xlu0 %1235, %v20
  %v1237 = vpop.permute.xlu0 %1236
  %1239 = vset.pattern.permute.xlu0 7
  %1240 = vperm.xlu0 %1239, %v21
  %v1241 = vpop.permute.xlu0 %1240
  %1243 = vset.pattern.permute.xlu0 7
  %1244 = vperm.xlu0 %1243, %v22
  %v1245 = vpop.permute.xlu0 %1244
  %1247 = vset.pattern.permute.xlu0 7
  %1248 = vperm.xlu0 %1247, %v23
  %v1249 = vpop.permute.xlu0 %1248
  %1251 = vset.pattern.permute.xlu0 7
  %1252 = vperm.xlu0 %1251, %v24
  %v1253 = vpop.permute.xlu0 %1252
  %1255 = vset.pattern.permute.xlu0 7
  %1256 = vperm.xlu0 %1255, %v25
  %v1257 = vpop.permute.xlu0 %1256
  %1259 = vset.pattern.permute.xlu0 7
  %1260 = vperm.xlu0 %1259, %v26
  %v1261 = vpop.permute.xlu0 %1260
  %1263 = vset.pattern.permute.xlu0 7
  %1264 = vperm.xlu0 %1263, %v27
  %v1265 = vpop.permute.xlu0 %1264
  %1267 = vset.pattern.permute.xlu0 7
  %1268 = vperm.xlu0 %1267, %v28
  %v1269 = vpop.permute.xlu0 %1268
  %1271 = vset.pattern.permute.xlu0 7
  %1272 = vperm.xlu0 %1271, %v29
  %v1273 = vpop.permute.xlu0 %1272
  %1275 = vset.pattern.permute.xlu0 7
  %1276 = vperm.xlu0 %1275, %v30
  %v1277 = vpop.permute.xlu0 %1276
  %1279 = vset.pattern.permute.xlu0 7
  %1280 = vperm.xlu0 %1279, %v31
  %v1281 = vpop.permute.xlu0 %1280
  %1283 = vset.pattern.permute.xlu0 7
  %1284 = vperm.xlu0 %1283, %v32
  %v1285 = vpop.permute.xlu0 %1284
  %1287 = vset.pattern.permute.xlu0 7
  %1288 = vperm.xlu0 %1287, %v33
  %v1289 = vpop.permute.xlu0 %1288
  %1291 = vset.pattern.permute.xlu0 7
  %1292 = vperm.xlu0 %1291, %v34
  %v1293 = vpop.permute.xlu0 %1292
  %1295 = vset.pattern.permute.xlu0 7
  %1296 = vperm.xlu0 %1295, %v35
  %v1297 = vpop.permute.xlu0 %1296
  %1299 = vset.pattern.permute.xlu0 7
  %1300 = vperm.xlu0 %1299, %v36
  %v1301 = vpop.permute.xlu0 %1300
  %1303 = vset.pattern.permute.xlu0 7
  %1304 = vperm.xlu0 %1303, %v37
  %v1305 = vpop.permute.xlu0 %1304
  %1307 = vset.pattern.permute.xlu0 7
  %1308 = vperm.xlu0 %1307, %v38
  %v1309 = vpop.permute.xlu0 %1308
  %1311 = vset.pattern.permute.xlu0 7
  %1312 = vperm.xlu0 %1311, %v39
  %v1313 = vpop.permute.xlu0 %1312
  %1315 = vset.pattern.permute.xlu0 7
  %1316 = vperm.xlu0 %1315, %v40
  %v1317 = vpop.permute.xlu0 %1316
  %v1319 = vperm.slane %v41, 7
  %v1320 = vmul.f32 %v1213, %v1319
  %v1321 = vmul.f32 %v1217, %v1319
  %v1322 = vmul.f32 %v1221, %v1319
  %v1323 = vmul.f32 %v1225, %v1319
  %v1324 = vmul.f32 %v1229, %v1319
  %v1325 = vmul.f32 %v1233, %v1319
  %v1326 = vmul.f32 %v1237, %v1319
  %v1327 = vmul.f32 %v1241, %v1319
  %v1328 = vmul.f32 %v1245, %v1319
  %v1329 = vmul.f32 %v1249, %v1319
  %v1330 = vmul.f32 %v1253, %v1319
  %v1331 = vmul.f32 %v1257, %v1319
  %v1332 = vmul.f32 %v1261, %v1319
  %v1333 = vmul.f32 %v1265, %v1319
  %v1334 = vmul.f32 %v1269, %v1319
  %v1335 = vmul.f32 %v1273, %v1319
  %v1336 = vmul.f32 %v1277, %v1319
  %v1337 = vmul.f32 %v1281, %v1319
  %v1338 = vmul.f32 %v1285, %v1319
  %v1339 = vmul.f32 %v1289, %v1319
  %v1340 = vmul.f32 %v1293, %v1319
  %v1341 = vmul.f32 %v1297, %v1319
  %v1342 = vmul.f32 %v1301, %v1319
  %v1343 = vmul.f32 %v1305, %v1319
  %v1344 = vmul.f32 %v1309, %v1319
  %v1345 = vmul.f32 %v1313, %v1319
  %v1346 = vmul.f32 %v1317, %v1319
  %v1347 = vadd.f32 %v1184, %v1320
  %v1348 = vadd.f32 %v1185, %v1321
  %v1349 = vadd.f32 %v1186, %v1322
  %v1350 = vadd.f32 %v1187, %v1323
  %v1351 = vadd.f32 %v1188, %v1324
  %v1352 = vadd.f32 %v1189, %v1325
  %v1353 = vadd.f32 %v1190, %v1326
  %v1354 = vadd.f32 %v1191, %v1327
  %v1355 = vadd.f32 %v1192, %v1328
  %v1356 = vadd.f32 %v1193, %v1329
  %v1357 = vadd.f32 %v1194, %v1330
  %v1358 = vadd.f32 %v1195, %v1331
  %v1359 = vadd.f32 %v1196, %v1332
  %v1360 = vadd.f32 %v1197, %v1333
  %v1361 = vadd.f32 %v1198, %v1334
  %v1362 = vadd.f32 %v1199, %v1335
  %v1363 = vadd.f32 %v1200, %v1336
  %v1364 = vadd.f32 %v1201, %v1337
  %v1365 = vadd.f32 %v1202, %v1338
  %v1366 = vadd.f32 %v1203, %v1339
  %v1367 = vadd.f32 %v1204, %v1340
  %v1368 = vadd.f32 %v1205, %v1341
  %v1369 = vadd.f32 %v1206, %v1342
  %v1370 = vadd.f32 %v1207, %v1343
  %v1371 = vadd.f32 %v1208, %v1344
  %v1372 = vadd.f32 %v1209, %v1345
  %v1373 = vadd.f32 %v1210, %v1346
  %1374 = vset.pattern.permute.xlu0 8
  %1375 = vperm.xlu0 %1374, %v14
  %v1376 = vpop.permute.xlu0 %1375
  %1378 = vset.pattern.permute.xlu0 8
  %1379 = vperm.xlu0 %1378, %v15
  %v1380 = vpop.permute.xlu0 %1379
  %1382 = vset.pattern.permute.xlu0 8
  %1383 = vperm.xlu0 %1382, %v16
  %v1384 = vpop.permute.xlu0 %1383
  %1386 = vset.pattern.permute.xlu0 8
  %1387 = vperm.xlu0 %1386, %v17
  %v1388 = vpop.permute.xlu0 %1387
  %1390 = vset.pattern.permute.xlu0 8
  %1391 = vperm.xlu0 %1390, %v18
  %v1392 = vpop.permute.xlu0 %1391
  %1394 = vset.pattern.permute.xlu0 8
  %1395 = vperm.xlu0 %1394, %v19
  %v1396 = vpop.permute.xlu0 %1395
  %1398 = vset.pattern.permute.xlu0 8
  %1399 = vperm.xlu0 %1398, %v20
  %v1400 = vpop.permute.xlu0 %1399
  %1402 = vset.pattern.permute.xlu0 8
  %1403 = vperm.xlu0 %1402, %v21
  %v1404 = vpop.permute.xlu0 %1403
  %1406 = vset.pattern.permute.xlu0 8
  %1407 = vperm.xlu0 %1406, %v22
  %v1408 = vpop.permute.xlu0 %1407
  %1410 = vset.pattern.permute.xlu0 8
  %1411 = vperm.xlu0 %1410, %v23
  %v1412 = vpop.permute.xlu0 %1411
  %1414 = vset.pattern.permute.xlu0 8
  %1415 = vperm.xlu0 %1414, %v24
  %v1416 = vpop.permute.xlu0 %1415
  %1418 = vset.pattern.permute.xlu0 8
  %1419 = vperm.xlu0 %1418, %v25
  %v1420 = vpop.permute.xlu0 %1419
  %1422 = vset.pattern.permute.xlu0 8
  %1423 = vperm.xlu0 %1422, %v26
  %v1424 = vpop.permute.xlu0 %1423
  %1426 = vset.pattern.permute.xlu0 8
  %1427 = vperm.xlu0 %1426, %v27
  %v1428 = vpop.permute.xlu0 %1427
  %1430 = vset.pattern.permute.xlu0 8
  %1431 = vperm.xlu0 %1430, %v28
  %v1432 = vpop.permute.xlu0 %1431
  %1434 = vset.pattern.permute.xlu0 8
  %1435 = vperm.xlu0 %1434, %v29
  %v1436 = vpop.permute.xlu0 %1435
  %1438 = vset.pattern.permute.xlu0 8
  %1439 = vperm.xlu0 %1438, %v30
  %v1440 = vpop.permute.xlu0 %1439
  %1442 = vset.pattern.permute.xlu0 8
  %1443 = vperm.xlu0 %1442, %v31
  %v1444 = vpop.permute.xlu0 %1443
  %1446 = vset.pattern.permute.xlu0 8
  %1447 = vperm.xlu0 %1446, %v32
  %v1448 = vpop.permute.xlu0 %1447
  %1450 = vset.pattern.permute.xlu0 8
  %1451 = vperm.xlu0 %1450, %v33
  %v1452 = vpop.permute.xlu0 %1451
  %1454 = vset.pattern.permute.xlu0 8
  %1455 = vperm.xlu0 %1454, %v34
  %v1456 = vpop.permute.xlu0 %1455
  %1458 = vset.pattern.permute.xlu0 8
  %1459 = vperm.xlu0 %1458, %v35
  %v1460 = vpop.permute.xlu0 %1459
  %1462 = vset.pattern.permute.xlu0 8
  %1463 = vperm.xlu0 %1462, %v36
  %v1464 = vpop.permute.xlu0 %1463
  %1466 = vset.pattern.permute.xlu0 8
  %1467 = vperm.xlu0 %1466, %v37
  %v1468 = vpop.permute.xlu0 %1467
  %1470 = vset.pattern.permute.xlu0 8
  %1471 = vperm.xlu0 %1470, %v38
  %v1472 = vpop.permute.xlu0 %1471
  %1474 = vset.pattern.permute.xlu0 8
  %1475 = vperm.xlu0 %1474, %v39
  %v1476 = vpop.permute.xlu0 %1475
  %1478 = vset.pattern.permute.xlu0 8
  %1479 = vperm.xlu0 %1478, %v40
  %v1480 = vpop.permute.xlu0 %1479
  %v1482 = vperm.slane %v42, 0
  %v1483 = vmul.f32 %v1376, %v1482
  %v1484 = vmul.f32 %v1380, %v1482
  %v1485 = vmul.f32 %v1384, %v1482
  %v1486 = vmul.f32 %v1388, %v1482
  %v1487 = vmul.f32 %v1392, %v1482
  %v1488 = vmul.f32 %v1396, %v1482
  %v1489 = vmul.f32 %v1400, %v1482
  %v1490 = vmul.f32 %v1404, %v1482
  %v1491 = vmul.f32 %v1408, %v1482
  %v1492 = vmul.f32 %v1412, %v1482
  %v1493 = vmul.f32 %v1416, %v1482
  %v1494 = vmul.f32 %v1420, %v1482
  %v1495 = vmul.f32 %v1424, %v1482
  %v1496 = vmul.f32 %v1428, %v1482
  %v1497 = vmul.f32 %v1432, %v1482
  %v1498 = vmul.f32 %v1436, %v1482
  %v1499 = vmul.f32 %v1440, %v1482
  %v1500 = vmul.f32 %v1444, %v1482
  %v1501 = vmul.f32 %v1448, %v1482
  %v1502 = vmul.f32 %v1452, %v1482
  %v1503 = vmul.f32 %v1456, %v1482
  %v1504 = vmul.f32 %v1460, %v1482
  %v1505 = vmul.f32 %v1464, %v1482
  %v1506 = vmul.f32 %v1468, %v1482
  %v1507 = vmul.f32 %v1472, %v1482
  %v1508 = vmul.f32 %v1476, %v1482
  %v1509 = vmul.f32 %v1480, %v1482
  %v1510 = vadd.f32 %v1347, %v1483
  %v1511 = vadd.f32 %v1348, %v1484
  %v1512 = vadd.f32 %v1349, %v1485
  %v1513 = vadd.f32 %v1350, %v1486
  %v1514 = vadd.f32 %v1351, %v1487
  %v1515 = vadd.f32 %v1352, %v1488
  %v1516 = vadd.f32 %v1353, %v1489
  %v1517 = vadd.f32 %v1354, %v1490
  %v1518 = vadd.f32 %v1355, %v1491
  %v1519 = vadd.f32 %v1356, %v1492
  %v1520 = vadd.f32 %v1357, %v1493
  %v1521 = vadd.f32 %v1358, %v1494
  %v1522 = vadd.f32 %v1359, %v1495
  %v1523 = vadd.f32 %v1360, %v1496
  %v1524 = vadd.f32 %v1361, %v1497
  %v1525 = vadd.f32 %v1362, %v1498
  %v1526 = vadd.f32 %v1363, %v1499
  %v1527 = vadd.f32 %v1364, %v1500
  %v1528 = vadd.f32 %v1365, %v1501
  %v1529 = vadd.f32 %v1366, %v1502
  %v1530 = vadd.f32 %v1367, %v1503
  %v1531 = vadd.f32 %v1368, %v1504
  %v1532 = vadd.f32 %v1369, %v1505
  %v1533 = vadd.f32 %v1370, %v1506
  %v1534 = vadd.f32 %v1371, %v1507
  %v1535 = vadd.f32 %v1372, %v1508
  %v1536 = vadd.f32 %v1373, %v1509
  %v1537 = vld [vmem:[%s2] sm:$0x1]
  %v1539 = vperm.slane %v1537, 0
  %v1541 = vadd.f32 %v1510, %v1539
  %v1542 = vadd.f32 %v1511, %v1539
  %v1543 = vadd.f32 %v1512, %v1539
  %v1544 = vadd.f32 %v1513, %v1539
  %v1545 = vadd.f32 %v1514, %v1539
  %v1546 = vadd.f32 %v1515, %v1539
  %v1547 = vadd.f32 %v1516, %v1539
  %v1548 = vadd.f32 %v1517, %v1539
  %v1549 = vadd.f32 %v1518, %v1539
  %v1550 = vadd.f32 %v1519, %v1539
  %v1551 = vadd.f32 %v1520, %v1539
  %v1552 = vadd.f32 %v1521, %v1539
  %v1553 = vadd.f32 %v1522, %v1539
  %v1554 = vadd.f32 %v1523, %v1539
  %v1555 = vadd.f32 %v1524, %v1539
  %v1556 = vadd.f32 %v1525, %v1539
  %v1557 = vadd.f32 %v1526, %v1539
  %v1558 = vadd.f32 %v1527, %v1539
  %v1559 = vadd.f32 %v1528, %v1539
  %v1560 = vadd.f32 %v1529, %v1539
  %v1561 = vadd.f32 %v1530, %v1539
  %v1562 = vadd.f32 %v1531, %v1539
  %v1563 = vadd.f32 %v1532, %v1539
  %v1564 = vadd.f32 %v1533, %v1539
  %v1565 = vadd.f32 %v1534, %v1539
  %v1566 = vadd.f32 %v1535, %v1539
  %v1567 = vadd.f32 %v1536, %v1539
  %v1568 = vmax.f32 %v1541, 0.0
  %v1569 = vmax.f32 %v1542, 0.0
  %v1570 = vmax.f32 %v1543, 0.0
  %v1571 = vmax.f32 %v1544, 0.0
  %v1572 = vmax.f32 %v1545, 0.0
  %v1573 = vmax.f32 %v1546, 0.0
  %v1574 = vmax.f32 %v1547, 0.0
  %v1575 = vmax.f32 %v1548, 0.0
  %v1576 = vmax.f32 %v1549, 0.0
  %v1577 = vmax.f32 %v1550, 0.0
  %v1578 = vmax.f32 %v1551, 0.0
  %v1579 = vmax.f32 %v1552, 0.0
  %v1580 = vmax.f32 %v1553, 0.0
  %v1581 = vmax.f32 %v1554, 0.0
  %v1582 = vmax.f32 %v1555, 0.0
  %v1583 = vmax.f32 %v1556, 0.0
  %v1584 = vmax.f32 %v1557, 0.0
  %v1585 = vmax.f32 %v1558, 0.0
  %v1586 = vmax.f32 %v1559, 0.0
  %v1587 = vmax.f32 %v1560, 0.0
  %v1588 = vmax.f32 %v1561, 0.0
  %v1589 = vmax.f32 %v1562, 0.0
  %v1590 = vmax.f32 %v1563, 0.0
  %v1591 = vmax.f32 %v1564, 0.0
  %v1592 = vmax.f32 %v1565, 0.0
  %v1593 = vmax.f32 %v1566, 0.0
  %v1594 = vmax.f32 %v1567, 0.0
  %v1595 = vpack.c.bf16 %v1568, %v1568
  %v1596 = vpack.c.bf16 %v1569, %v1569
  %v1597 = vpack.c.bf16 %v1570, %v1570
  %v1598 = vpack.c.bf16 %v1571, %v1571
  %v1599 = vpack.c.bf16 %v1572, %v1572
  %v1600 = vpack.c.bf16 %v1573, %v1573
  %v1601 = vpack.c.bf16 %v1574, %v1574
  %v1602 = vpack.c.bf16 %v1575, %v1575
  %v1603 = vpack.c.bf16 %v1576, %v1576
  %v1604 = vpack.c.bf16 %v1577, %v1577
  %v1605 = vpack.c.bf16 %v1578, %v1578
  %v1606 = vpack.c.bf16 %v1579, %v1579
  %v1607 = vpack.c.bf16 %v1580, %v1580
  %v1608 = vpack.c.bf16 %v1581, %v1581
  %v1609 = vpack.c.bf16 %v1582, %v1582
  %v1610 = vpack.c.bf16 %v1583, %v1583
  %v1611 = vpack.c.bf16 %v1584, %v1584
  %v1612 = vpack.c.bf16 %v1585, %v1585
  %v1613 = vpack.c.bf16 %v1586, %v1586
  %v1614 = vpack.c.bf16 %v1587, %v1587
  %v1615 = vpack.c.bf16 %v1588, %v1588
  %v1616 = vpack.c.bf16 %v1589, %v1589
  %v1617 = vpack.c.bf16 %v1590, %v1590
  %v1618 = vpack.c.bf16 %v1591, %v1591
  %v1619 = vpack.c.bf16 %v1592, %v1592
  %v1620 = vpack.c.bf16 %v1593, %v1593
  %v1621 = vpack.c.bf16 %v1594, %v1594
  %vm1622 = vcmask 257024
  %1623 = vst.msk [vmem:[%s3] sm:$0xf] %vm1622, %v1595
  %1624 = vst.msk [vmem:[%s3 + $0x4] sm:$0xf] %vm1622, %v1596
  %1625 = vst.msk [vmem:[%s3 + $0x8] sm:$0xf] %vm1622, %v1597
  %1626 = vst.msk [vmem:[%s3 + $0xc] sm:$0xf] %vm1622, %v1598
  %1627 = vst.msk [vmem:[%s3 + $0x10] sm:$0xf] %vm1622, %v1599
  %1628 = vst.msk [vmem:[%s3 + $0x14] sm:$0xf] %vm1622, %v1600
  %1629 = vst.msk [vmem:[%s3 + $0x18] sm:$0xf] %vm1622, %v1601
  %1630 = vst.msk [vmem:[%s3 + $0x1c] sm:$0xf] %vm1622, %v1602
  %1631 = vst.msk [vmem:[%s3 + $0x20] sm:$0xf] %vm1622, %v1603
  %1632 = vst.msk [vmem:[%s3 + $0x24] sm:$0xf] %vm1622, %v1604
  %1633 = vst.msk [vmem:[%s3 + $0x28] sm:$0xf] %vm1622, %v1605
  %1634 = vst.msk [vmem:[%s3 + $0x2c] sm:$0xf] %vm1622, %v1606
  %1635 = vst.msk [vmem:[%s3 + $0x30] sm:$0xf] %vm1622, %v1607
  %1636 = vst.msk [vmem:[%s3 + $0x34] sm:$0xf] %vm1622, %v1608
  %1637 = vst.msk [vmem:[%s3 + $0x38] sm:$0xf] %vm1622, %v1609
  %1638 = vst.msk [vmem:[%s3 + $0x3c] sm:$0xf] %vm1622, %v1610
  %1639 = vst.msk [vmem:[%s3 + $0x40] sm:$0xf] %vm1622, %v1611
  %1640 = vst.msk [vmem:[%s3 + $0x44] sm:$0xf] %vm1622, %v1612
  %1641 = vst.msk [vmem:[%s3 + $0x48] sm:$0xf] %vm1622, %v1613
  %1642 = vst.msk [vmem:[%s3 + $0x4c] sm:$0xf] %vm1622, %v1614
  %1643 = vst.msk [vmem:[%s3 + $0x50] sm:$0xf] %vm1622, %v1615
  %1644 = vst.msk [vmem:[%s3 + $0x54] sm:$0xf] %vm1622, %v1616
  %1645 = vst.msk [vmem:[%s3 + $0x58] sm:$0xf] %vm1622, %v1617
  %1646 = vst.msk [vmem:[%s3 + $0x5c] sm:$0xf] %vm1622, %v1618
  %1647 = vst.msk [vmem:[%s3 + $0x60] sm:$0xf] %vm1622, %v1619
  %1648 = vst.msk [vmem:[%s3 + $0x64] sm:$0xf] %vm1622, %v1620
  %vm1649 = vcmask 253952
  %1650 = vst.msk [vmem:[%s3 + $0x68] sm:$0x1] %vm1649, %v1621
  // Predicated region
  $region14: #{base_encoder_forward.3} parent=0 // pred_check
    _
  $region15: #{base_encoder_forward.3} parent=0 // pred_check_branch
    %1652 = sbr.rel (0) target = $region17
  $region16: #{base_encoder_forward.3} parent=0 // pred_region
    _
  $region17: #{base_encoder_forward.3} parent=0 // pred_fallthru
    _
  // Predicated region
  $region18: #{base_encoder_forward.3} parent=0 // pred_check
    _
  $region19: #{base_encoder_forward.3} parent=0 // pred_check_branch
    %1654 = sbr.rel (0) target = $region21
  $region20: #{base_encoder_forward.3} parent=0 // pred_region
    _
  $region21: #{base_encoder_forward.3} parent=0 // pred_fallthru
    _

// kernel: base_encoder_forward.4
$region0: #{base_encoder_forward.4}
  #allocation0 [shape = 'u32[]', space=smem, size = 0x4, offset = 0x4, fixed_abs, tag = 'smem constant byte address 0x4 - core index']
  #allocation1 [shape = 'u32[72,128]{1,0:T(1,128)}', space=vmem, size = 0x9000, scoped, tag = 'internal scratch']
  %s0 = inlined_call_operand.vmem [shape: bf16[42,288], index: 0, kind: input, shape index: {}]
  %s1 = inlined_call_operand.vmem [shape: bf16[288,32], index: 1, kind: input, shape index: {}]
  %s2 = inlined_call_operand.vmem [shape: f32[1,32], index: 2, kind: input, shape index: {}]
  %s3 = inlined_call_operand.vmem [shape: bf16[42,32], index: 3, kind: output, shape index: {}]
  %s4 = sld [smem:[#allocation0]]
  $region22: #{base_encoder_forward.4} parent=0
    _
  %s6 = ssub.s32 1, %s4
  %s7 = scalar_select 0, %s6, %s4
  // Predicated region
  $region2: #{base_encoder_forward.4} parent=0 // pred_check
    _
  $region3: #{base_encoder_forward.4} parent=0 // pred_check_branch
    %9 = sbr.rel (0) target = $region5
  $region4: #{base_encoder_forward.4} parent=0 // pred_region
    _
  $region5: #{base_encoder_forward.4} parent=0 // pred_fallthru
    _
  // Predicated region
  $region6: #{base_encoder_forward.4} parent=0 // pred_check
    _
  $region7: #{base_encoder_forward.4} parent=0 // pred_check_branch
    %11 = sbr.rel (0) target = $region9
  $region8: #{base_encoder_forward.4} parent=0 // pred_region
    _
  $region9: #{base_encoder_forward.4} parent=0 // pred_fallthru
    _
  // Predicated region
  $region10: #{base_encoder_forward.4} parent=0 // pred_check
    _
  $region11: #{base_encoder_forward.4} parent=0 // pred_check_branch
    %13 = sbr.rel (0) target = $region13
  $region12: #{base_encoder_forward.4} parent=0 // pred_region
    _
  $region13: #{base_encoder_forward.4} parent=0 // pred_fallthru
    _
  %v15 = vld [vmem:[%s0] sm:$0xff]
  %v16 = vld [vmem:[%s0 + $0x8] sm:$0xf]
  %v17 = vld [vmem:[%s0 + $0xc] sm:$0xff]
  %v18 = vld [vmem:[%s0 + $0x14] sm:$0xf]
  %v19 = vld [vmem:[%s0 + $0x18] sm:$0xff]
  %v20 = vld [vmem:[%s0 + $0x20] sm:$0xf]
  %v21 = vld [vmem:[%s0 + $0x24] sm:$0xff]
  %v22 = vld [vmem:[%s0 + $0x2c] sm:$0xf]
  %v23 = vld [vmem:[%s0 + $0x30] sm:$0xff]
  %v24 = vld [vmem:[%s0 + $0x38] sm:$0xf]
  %v25 = vld [vmem:[%s0 + $0x3c] sm:$0x11]
  %v26 = vld [vmem:[%s0 + $0x44] sm:$0x1]
  %v27 = vld [vmem:[%s1] sm:$0xf]
  %v28 = vld [vmem:[%s1 + $0x4] sm:$0xf]
  %v29 = vld [vmem:[%s1 + $0x8] sm:$0xf]
  %v30 = vld [vmem:[%s1 + $0xc] sm:$0xf]
  %v31 = vld [vmem:[%s1 + $0x10] sm:$0xf]
  %v32 = vld [vmem:[%s1 + $0x14] sm:$0xf]
  %v33 = vld [vmem:[%s1 + $0x18] sm:$0xf]
  %v34 = vld [vmem:[%s1 + $0x1c] sm:$0xf]
  %v35 = vld [vmem:[%s1 + $0x20] sm:$0xf]
  %v36 = vld [vmem:[%s1 + $0x24] sm:$0xf]
  %v37 = vld [vmem:[%s1 + $0x28] sm:$0xf]
  %v38 = vld [vmem:[%s1 + $0x2c] sm:$0xf]
  %v39 = vld [vmem:[%s1 + $0x30] sm:$0xf]
  %v40 = vld [vmem:[%s1 + $0x34] sm:$0xf]
  %v41 = vld [vmem:[%s1 + $0x38] sm:$0xf]
  %v42 = vld [vmem:[%s1 + $0x3c] sm:$0xf]
  %v43 = vld [vmem:[%s1 + $0x40] sm:$0xf]
  %v44 = vld [vmem:[%s1 + $0x44] sm:$0xf]
  %v45 = vld [vmem:[%s1 + $0x48] sm:$0xf]
  %v46 = vld [vmem:[%s1 + $0x4c] sm:$0xf]
  %v47 = vld [vmem:[%s1 + $0x50] sm:$0xf]
  %v48 = vld [vmem:[%s1 + $0x54] sm:$0xf]
  %v49 = vld [vmem:[%s1 + $0x58] sm:$0xf]
  %v50 = vld [vmem:[%s1 + $0x5c] sm:$0xf]
  %v51 = vld [vmem:[%s1 + $0x60] sm:$0xf]
  %v52 = vld [vmem:[%s1 + $0x64] sm:$0xf]
  %v53 = vld [vmem:[%s1 + $0x68] sm:$0xf]
  %v54 = vld [vmem:[%s1 + $0x6c] sm:$0xf]
  %v55 = vld [vmem:[%s1 + $0x70] sm:$0xf]
  %v56 = vld [vmem:[%s1 + $0x74] sm:$0xf]
  %v57 = vld [vmem:[%s1 + $0x78] sm:$0xf]
  %v58 = vld [vmem:[%s1 + $0x7c] sm:$0xf]
  %v59 = vld [vmem:[%s1 + $0x80] sm:$0xf]
  %v60 = vld [vmem:[%s1 + $0x84] sm:$0xf]
  %v61 = vld [vmem:[%s1 + $0x88] sm:$0xf]
  %v62 = vld [vmem:[%s1 + $0x8c] sm:$0xf]
  %v63 = vld [vmem:[%s2] sm:$0x1]
  %v65 = vperm.slane %v63, 0
  %v79 = vunpack.c.l.b16 %v15
  %v80 = vunpack.c.h.b16 %v15
  %v81 = vunpack.c.l.b16 %v16
  %v82 = vunpack.c.l.b16 %v17
  %v83 = vunpack.c.h.b16 %v17
  %v84 = vunpack.c.l.b16 %v18
  %v85 = vunpack.c.l.b16 %v19
  %v86 = vunpack.c.h.b16 %v19
  %v87 = vunpack.c.l.b16 %v20
  %v88 = vunpack.c.l.b16 %v21
  %v89 = vunpack.c.h.b16 %v21
  %v90 = vunpack.c.l.b16 %v22
  %v91 = vunpack.c.l.b16 %v23
  %v92 = vunpack.c.h.b16 %v23
  %v93 = vunpack.c.l.b16 %v24
  %v94 = vunpack.c.l.b16 %v25
  %v95 = vunpack.c.h.b16 %v25
  %v96 = vunpack.c.l.b16 %v26
  %v97 = vpack.c.b16 %v82, %v79
  %v98 = vpack.c.b16 %v83, %v80
  %v99 = vpack.c.b16 %v84, %v81
  %v100 = vpack.c.b16 %v88, %v85
  %v101 = vpack.c.b16 %v89, %v86
  %v102 = vpack.c.b16 %v90, %v87
  %v103 = vpack.c.b16 %v94, %v91
  %v104 = vpack.c.b16 %v95, %v92
  %v105 = vpack.c.b16 %v96, %v93
  %v148 = vunpack.c.l.b16 %v27
  %v149 = vunpack.c.l.b16 %v28
  %v150 = vunpack.c.l.b16 %v29
  %v151 = vunpack.c.l.b16 %v30
  %v152 = vunpack.c.l.b16 %v31
  %v153 = vunpack.c.l.b16 %v32
  %v154 = vunpack.c.l.b16 %v33
  %v155 = vunpack.c.l.b16 %v34
  %v156 = vunpack.c.l.b16 %v35
  %v157 = vunpack.c.l.b16 %v36
  %v158 = vunpack.c.l.b16 %v37
  %v159 = vunpack.c.l.b16 %v38
  %v160 = vunpack.c.l.b16 %v39
  %v161 = vunpack.c.l.b16 %v40
  %v162 = vunpack.c.l.b16 %v41
  %v163 = vunpack.c.l.b16 %v42
  %v164 = vunpack.c.l.b16 %v43
  %v165 = vunpack.c.l.b16 %v44
  %v166 = vunpack.c.l.b16 %v45
  %v167 = vunpack.c.l.b16 %v46
  %v168 = vunpack.c.l.b16 %v47
  %v169 = vunpack.c.l.b16 %v48
  %v170 = vunpack.c.l.b16 %v49
  %v171 = vunpack.c.l.b16 %v50
  %v172 = vunpack.c.l.b16 %v51
  %v173 = vunpack.c.l.b16 %v52
  %v174 = vunpack.c.l.b16 %v53
  %v175 = vunpack.c.l.b16 %v54
  %v176 = vunpack.c.l.b16 %v55
  %v177 = vunpack.c.l.b16 %v56
  %v178 = vunpack.c.l.b16 %v57
  %v179 = vunpack.c.l.b16 %v58
  %v180 = vunpack.c.l.b16 %v59
  %v181 = vunpack.c.l.b16 %v60
  %v182 = vunpack.c.l.b16 %v61
  %v183 = vunpack.c.l.b16 %v62
  %v184 = vpack.c.b16 %v149, %v148
  %v185 = vpack.c.b16 %v151, %v150
  %v186 = vpack.c.b16 %v153, %v152
  %v187 = vpack.c.b16 %v155, %v154
  %v188 = vpack.c.b16 %v157, %v156
  %v189 = vpack.c.b16 %v159, %v158
  %v190 = vpack.c.b16 %v161, %v160
  %v191 = vpack.c.b16 %v163, %v162
  %v192 = vpack.c.b16 %v165, %v164
  %v193 = vpack.c.b16 %v167, %v166
  %v194 = vpack.c.b16 %v169, %v168
  %v195 = vpack.c.b16 %v171, %v170
  %v196 = vpack.c.b16 %v173, %v172
  %v197 = vpack.c.b16 %v175, %v174
  %v198 = vpack.c.b16 %v177, %v176
  %v199 = vpack.c.b16 %v179, %v178
  %v200 = vpack.c.b16 %v181, %v180
  %v201 = vpack.c.b16 %v183, %v182
  %vm220 = vcmask 261120
  %v222 = vsel %vm220, %v99, 0
  %v225 = vsel %vm220, %v102, 0
  %v228 = vsel %vm220, %v105, 0
  %230 = vmatpush.bf16.msra.mxu0 %v191
  %231 = vmatpush.bf16.msra.mxu0 %v190
  %232 = vmatpush.bf16.msra.mxu0 %v189
  %233 = vmatpush.bf16.msra.mxu0 %v188
  %234 = vmatpush.bf16.msra.mxu0 %v187
  %235 = vmatpush.bf16.msra.mxu0 %v186
  %236 = vmatpush.bf16.msra.mxu0 %v185
  %237 = vmatpush.bf16.msra.mxu0 %v184
  %238 = vmatmul.bf16.gmra.mxu0 %v97
  %v239 = vpop.f32.mrf.mxu0
  %v240 = vadd.f32 %v65, %v239
  %v241 = vpop.f32.mrf.mxu0
  %v242 = vadd.f32 %v65, %v241
  %243 = vmatmul.bf16.gmra.mxu0 %v100
  %v244 = vpop.f32.mrf.mxu0
  %v245 = vadd.f32 %v65, %v244
  %v246 = vpop.f32.mrf.mxu0
  %v247 = vadd.f32 %v65, %v246
  %248 = vmatmul.bf16.gmra.mxu0 %v103
  %v249 = vpop.f32.mrf.mxu0
  %v250 = vadd.f32 %v65, %v249
  %v251 = vpop.f32.mrf.mxu0
  %v252 = vadd.f32 %v65, %v251
  %253 = vdwg.mxu0
  %254 = vmatpush.bf16.msra.mxu0 %v199
  %255 = vmatpush.bf16.msra.mxu0 %v198
  %256 = vmatpush.bf16.msra.mxu0 %v197
  %257 = vmatpush.bf16.msra.mxu0 %v196
  %258 = vmatpush.bf16.msra.mxu0 %v195
  %259 = vmatpush.bf16.msra.mxu0 %v194
  %260 = vmatpush.bf16.msra.mxu0 %v193
  %261 = vmatpush.bf16.msra.mxu0 %v192
  %262 = vmatmul.bf16.gmra.mxu0 %v98
  %v263 = vpop.f32.mrf.mxu0
  %v264 = vadd.f32 %v240, %v263
  %v265 = vpop.f32.mrf.mxu0
  %v266 = vadd.f32 %v242, %v265
  %267 = vmatmul.bf16.gmra.mxu0 %v101
  %v268 = vpop.f32.mrf.mxu0
  %v269 = vadd.f32 %v245, %v268
  %v270 = vpop.f32.mrf.mxu0
  %v271 = vadd.f32 %v247, %v270
  %272 = vmatmul.bf16.gmra.mxu0 %v104
  %v273 = vpop.f32.mrf.mxu0
  %v274 = vadd.f32 %v250, %v273
  %v275 = vpop.f32.mrf.mxu0
  %v276 = vadd.f32 %v252, %v275
  %277 = vdwg.mxu0
  %278 = vmatpush.bf16.msra.mxu0 0
  %279 = vmatpush.bf16.msra.mxu0 0
  %280 = vmatpush.bf16.msra.mxu0 0
  %281 = vmatpush.bf16.msra.mxu0 0
  %282 = vmatpush.bf16.msra.mxu0 0
  %283 = vmatpush.bf16.msra.mxu0 0
  %284 = vmatpush.bf16.msra.mxu0 %v201
  %285 = vmatpush.bf16.msra.mxu0 %v200
  %286 = vmatmul.bf16.gmra.mxu0 %v222
  %v287 = vpop.f32.mrf.mxu0
  %v288 = vadd.f32 %v264, %v287
  %v289 = vpop.f32.mrf.mxu0
  %v290 = vadd.f32 %v266, %v289
  %291 = vmatmul.bf16.gmra.mxu0 %v225
  %v292 = vpop.f32.mrf.mxu0
  %v293 = vadd.f32 %v269, %v292
  %v294 = vpop.f32.mrf.mxu0
  %v295 = vadd.f32 %v271, %v294
  %296 = vmatmul.bf16.gmra.mxu0 %v228
  %v297 = vpop.f32.mrf.mxu0
  %v298 = vadd.f32 %v274, %v297
  %v299 = vpop.f32.mrf.mxu0
  %v300 = vadd.f32 %v276, %v299
  %301 = vdwg.mxu0
  %v302 = vmax.f32 %v288, 0.0
  %v303 = vmax.f32 %v290, 0.0
  %v304 = vmax.f32 %v293, 0.0
  %v305 = vmax.f32 %v295, 0.0
  %v306 = vmax.f32 %v298, 0.0
  %v307 = vmax.f32 %v300, 0.0
  %v308 = vpack.c.bf16 %v302, %v302
  %v309 = vpack.c.bf16 %v303, %v303
  %v310 = vpack.c.bf16 %v304, %v304
  %v311 = vpack.c.bf16 %v305, %v305
  %v312 = vpack.c.bf16 %v306, %v306
  %v313 = vpack.c.bf16 %v307, %v307
  %vm314 = vcmask 257024
  %315 = vst.msk [vmem:[%s3] sm:$0xf] %vm314, %v308
  %316 = vst.msk [vmem:[%s3 + $0x4] sm:$0xf] %vm314, %v309
  %317 = vst.msk [vmem:[%s3 + $0x8] sm:$0xf] %vm314, %v310
  %318 = vst.msk [vmem:[%s3 + $0xc] sm:$0xf] %vm314, %v311
  %319 = vst.msk [vmem:[%s3 + $0x10] sm:$0xf] %vm314, %v312
  %vm320 = vcmask 253952
  %321 = vst.msk [vmem:[%s3 + $0x14] sm:$0x1] %vm320, %v313
  // Predicated region
  $region14: #{base_encoder_forward.4} parent=0 // pred_check
    _
  $region15: #{base_encoder_forward.4} parent=0 // pred_check_branch
    %323 = sbr.rel (0) target = $region17
  $region16: #{base_encoder_forward.4} parent=0 // pred_region
    _
  $region17: #{base_encoder_forward.4} parent=0 // pred_fallthru
    _
  // Predicated region
  $region18: #{base_encoder_forward.4} parent=0 // pred_check
    _
  $region19: #{base_encoder_forward.4} parent=0 // pred_check_branch
    %325 = sbr.rel (0) target = $region21
  $region20: #{base_encoder_forward.4} parent=0 // pred_region
    _
  $region21: #{base_encoder_forward.4} parent=0 // pred_fallthru
    _

// kernel: tile.7
$region0: #{tile.7}
  %s0 = inlined_call_operand.vmem [shape: f32[2,7,32], index: 0, kind: input, shape index: {}]
  %s1 = inlined_call_operand.vmem [shape: f32[14,32], index: 1, kind: output, shape index: {}]
  %v2 = vld [vmem:[%s0] sm:$0x7f]
  %vm3 = vcmask 261120
  %4 = vst.msk [vmem:[%s1] sm:$0x7f] %vm3, %v2
  %s5 = scalar_lea.vmem %s0, 8
  %v6 = vld [vmem:[%s5] sm:$0x7f]
  %vm7 = vcmask 261120
  %s8 = scalar_lea.vmem %s1, 7
  %9 = vst.msk [vmem:[%s8] sm:$0x7f] %vm7, %v6

// kernel: base_encoder_forward.5
$region0: #{base_encoder_forward.5}
  #allocation0 [shape = 'u32[]', space=smem, size = 0x4, offset = 0x4, fixed_abs, tag = 'smem constant byte address 0x4 - core index']
  #allocation1 [shape = 'u32[72,128]{1,0:T(1,128)}', space=vmem, size = 0x9000, scoped, tag = 'internal scratch']
  %s0 = inlined_call_operand.vmem [shape: bf16[14,96], index: 0, kind: input, shape index: {}]
  %s1 = inlined_call_operand.vmem [shape: bf16[96,32], index: 1, kind: input, shape index: {}]
  %s2 = inlined_call_operand.vmem [shape: f32[1,32], index: 2, kind: input, shape index: {}]
  %s3 = inlined_call_operand.vmem [shape: f32[14,32], index: 3, kind: input, shape index: {}]
  %s4 = inlined_call_operand.vmem [shape: f32[1,32], index: 4, kind: input, shape index: {}]
  %s5 = inlined_call_operand.vmem [shape: f32[1,32], index: 5, kind: input, shape index: {}]
  %s6 = inlined_call_operand.vmem [shape: f32[14,32], index: 6, kind: output, shape index: {}]
  %s7 = sld [smem:[#allocation0]]
  $region34: #{base_encoder_forward.5} parent=0
    _
  %s9 = ssub.s32 1, %s7
  %s10 = scalar_select 0, %s9, %s7
  // Predicated region
  $region2: #{base_encoder_forward.5} parent=0 // pred_check
    _
  $region3: #{base_encoder_forward.5} parent=0 // pred_check_branch
    %12 = sbr.rel (0) target = $region5
  $region4: #{base_encoder_forward.5} parent=0 // pred_region
    _
  $region5: #{base_encoder_forward.5} parent=0 // pred_fallthru
    _
  // Predicated region
  $region6: #{base_encoder_forward.5} parent=0 // pred_check
    _
  $region7: #{base_encoder_forward.5} parent=0 // pred_check_branch
    %14 = sbr.rel (0) target = $region9
  $region8: #{base_encoder_forward.5} parent=0 // pred_region
    _
  $region9: #{base_encoder_forward.5} parent=0 // pred_fallthru
    _
  // Predicated region
  $region10: #{base_encoder_forward.5} parent=0 // pred_check
    _
  $region11: #{base_encoder_forward.5} parent=0 // pred_check_branch
    %16 = sbr.rel (0) target = $region13
  $region12: #{base_encoder_forward.5} parent=0 // pred_region
    _
  $region13: #{base_encoder_forward.5} parent=0 // pred_fallthru
    _
  // Predicated region
  $region14: #{base_encoder_forward.5} parent=0 // pred_check
    _
  $region15: #{base_encoder_forward.5} parent=0 // pred_check_branch
    %18 = sbr.rel (0) target = $region17
  $region16: #{base_encoder_forward.5} parent=0 // pred_region
    _
  $region17: #{base_encoder_forward.5} parent=0 // pred_fallthru
    _
  // Predicated region
  $region18: #{base_encoder_forward.5} parent=0 // pred_check
    _
  $region19: #{base_encoder_forward.5} parent=0 // pred_check_branch
    %20 = sbr.rel (0) target = $region21
  $region20: #{base_encoder_forward.5} parent=0 // pred_region
    _
  $region21: #{base_encoder_forward.5} parent=0 // pred_fallthru
    _
  // Predicated region
  $region22: #{base_encoder_forward.5} parent=0 // pred_check
    _
  $region23: #{base_encoder_forward.5} parent=0 // pred_check_branch
    %22 = sbr.rel (0) target = $region25
  $region24: #{base_encoder_forward.5} parent=0 // pred_region
    _
  $region25: #{base_encoder_forward.5} parent=0 // pred_fallthru
    _
  %v24 = vld [vmem:[%s0] sm:$0xf]
  %v25 = vld [vmem:[%s0 + $0x4] sm:$0x7]
  %v26 = vld [vmem:[%s1] sm:$0xf]
  %v27 = vld [vmem:[%s1 + $0x4] sm:$0xf]
  %v28 = vld [vmem:[%s1 + $0x8] sm:$0xf]
  %v29 = vld [vmem:[%s1 + $0xc] sm:$0xf]
  %v30 = vld [vmem:[%s1 + $0x10] sm:$0xf]
  %v31 = vld [vmem:[%s1 + $0x14] sm:$0xf]
  %v32 = vld [vmem:[%s1 + $0x18] sm:$0xf]
  %v33 = vld [vmem:[%s1 + $0x1c] sm:$0xf]
  %v34 = vld [vmem:[%s1 + $0x20] sm:$0xf]
  %v35 = vld [vmem:[%s1 + $0x24] sm:$0xf]
  %v36 = vld [vmem:[%s1 + $0x28] sm:$0xf]
  %v37 = vld [vmem:[%s1 + $0x2c] sm:$0xf]
  %v38 = vld [vmem:[%s2] sm:$0x1]
  %v40 = vperm.slane %v38, 0
  %v44 = vunpack.c.l.b16 %v24
  %v45 = vunpack.c.l.b16 %v25
  %v46 = vpack.c.b16 %v45, %v44
  %v59 = vunpack.c.l.b16 %v26
  %v60 = vunpack.c.l.b16 %v27
  %v61 = vunpack.c.l.b16 %v28
  %v62 = vunpack.c.l.b16 %v29
  %v63 = vunpack.c.l.b16 %v30
  %v64 = vunpack.c.l.b16 %v31
  %v65 = vunpack.c.l.b16 %v32
  %v66 = vunpack.c.l.b16 %v33
  %v67 = vunpack.c.l.b16 %v34
  %v68 = vunpack.c.l.b16 %v35
  %v69 = vunpack.c.l.b16 %v36
  %v70 = vunpack.c.l.b16 %v37
  %v71 = vpack.c.b16 %v60, %v59
  %v72 = vpack.c.b16 %v62, %v61
  %v73 = vpack.c.b16 %v64, %v63
  %v74 = vpack.c.b16 %v66, %v65
  %v75 = vpack.c.b16 %v68, %v67
  %v76 = vpack.c.b16 %v70, %v69
  %vm83 = vcmask 785408
  %v85 = vsel %vm83, %v46, 0
  %87 = vmatpush.bf16.msra.mxu0 0
  %88 = vmatpush.bf16.msra.mxu0 0
  %89 = vmatpush.bf16.msra.mxu0 %v76
  %90 = vmatpush.bf16.msra.mxu0 %v75
  %91 = vmatpush.bf16.msra.mxu0 %v74
  %92 = vmatpush.bf16.msra.mxu0 %v73
  %93 = vmatpush.bf16.msra.mxu0 %v72
  %94 = vmatpush.bf16.msra.mxu0 %v71
  %95 = vmatmul.bf16.gmra.mxu0 %v85
  %v96 = vpop.f32.mrf.mxu0
  %v97 = vadd.f32 %v40, %v96
  %v98 = vpop.f32.mrf.mxu0
  %v99 = vadd.f32 %v40, %v98
  %100 = vdwg.mxu0
  %v101 = vmul.f32 %v97, 5.656854
  %v102 = vmul.f32 %v99, 5.656854
  %v103 = vld [vmem:[%s3] sm:$0xff]
  %v104 = vld [vmem:[%s3 + $0x8] sm:$0x3f]
  %v105 = vadd.f32 %v101, %v103
  %v106 = vadd.f32 %v102, %v104
  %vm107 = vcmask 261120
  %v108 = vsel %vm107, %v105, 0.0
  %109 = vadd.xlane.f32.xlu0 %v108
  %v110 = vpop.xlane.xlu0 %109
  %vm111 = vcmask 259072
  %v112 = vsel %vm111, %v106, 0.0
  %113 = vadd.xlane.f32.xlu0 %v112
  %v114 = vpop.xlane.xlu0 %113
  %v115 = vrcp.pop 32.0
  %v116 = vmul.f32 32.0, %v115
  %v117 = vsub.f32 1.0, %v116
  %v118 = vmul.f32 %v115, %v117
  %v119 = vadd.f32 %v115, %v118
  %vm120 = vweird.f32 %v115
  %v121 = vsel %vm120, %v115, %v119
  %v122 = vmul.f32 %v110, %v121
  %v123 = vmul.f32 %v114, %v121
  %v124 = vsub.f32 %v105, %v122
  %v125 = vsub.f32 %v106, %v123
  %v126 = vmul.f32 %v124, %v124
  %v127 = vmul.f32 %v125, %v125
  %v128 = vsel %vm107, %v126, 0.0
  %129 = vadd.xlane.f32.xlu0 %v128
  %v130 = vpop.xlane.xlu0 %129
  %v131 = vsel %vm111, %v127, 0.0
  %132 = vadd.xlane.f32.xlu0 %v131
  %v133 = vpop.xlane.xlu0 %132
  %v134 = vmul.f32 %v130, %v121
  %v135 = vmul.f32 %v133, %v121
  %v136 = vadd.f32 %v134, 1e-12
  %v137 = vadd.f32 %v135, 1e-12
  %v138 = vrsqrt.pop %v136
  %v139 = vmul.f32 %v138, %v136
  %v140 = vmul.f32 %v139, %v138
  %v141 = vmul.f32 0.5, %v140
  %v142 = vsub.f32 1.5, %v141
  %v143 = vmul.f32 %v138, %v142
  %vm144 = vweird.f32 %v136
  %vm145 = vweird.f32 %v138
  %vm146 = vmor %vm144, %vm145
  %v147 = vsel %vm146, %v138, %v143
  %v148 = vrsqrt.pop %v137
  %v149 = vmul.f32 %v148, %v137
  %v150 = vmul.f32 %v149, %v148
  %v151 = vmul.f32 0.5, %v150
  %v152 = vsub.f32 1.5, %v151
  %v153 = vmul.f32 %v148, %v152
  %vm154 = vweird.f32 %v137
  %vm155 = vweird.f32 %v148
  %vm156 = vmor %vm154, %vm155
  %v157 = vsel %vm156, %v148, %v153
  %v158 = vmul.f32 %v124, %v147
  %v159 = vmul.f32 %v125, %v157
  %v160 = vld [vmem:[%s4] sm:$0x1]
  %v162 = vperm.slane %v160, 0
  %v164 = vmul.f32 %v158, %v162
  %v165 = vmul.f32 %v159, %v162
  %v166 = vld [vmem:[%s5] sm:$0x1]
  %v168 = vperm.slane %v166, 0
  %v170 = vadd.f32 %v164, %v168
  %v171 = vadd.f32 %v165, %v168
  %172 = vst.msk [vmem:[%s6] sm:$0xff] %vm107, %v170
  %173 = vst.msk [vmem:[%s6 + $0x8] sm:$0x3f] %vm111, %v171
  // Predicated region
  $region26: #{base_encoder_forward.5} parent=0 // pred_check
    _
  $region27: #{base_encoder_forward.5} parent=0 // pred_check_branch
    %175 = sbr.rel (0) target = $region29
  $region28: #{base_encoder_forward.5} parent=0 // pred_region
    _
  $region29: #{base_encoder_forward.5} parent=0 // pred_fallthru
    _
  // Predicated region
  $region30: #{base_encoder_forward.5} parent=0 // pred_check
    _
  $region31: #{base_encoder_forward.5} parent=0 // pred_check_branch
    %177 = sbr.rel (0) target = $region33
  $region32: #{base_encoder_forward.5} parent=0 // pred_region
    _
  $region33: #{base_encoder_forward.5} parent=0 // pred_fallthru
    _

</llo_original>
